<compile_context>
chip_gen: v7x
topology: tpu7x:2x2x1
jax: 0.10.0
libtpu: 0.0.40
codegen_flags: <defaults>
</compile_context>

<pallas_src>
import functools

import jax
import jax.numpy as jnp
from jax.experimental import pallas as pl
from jax.experimental.pallas import tpu as pltpu


def _set2set_kernel(x_ref, init_ref, wqh_ref, wr_ref, bg_ref,
                    wx_ref, wq2_ref, wr2_ref, mlpb_ref, out_ref,
                    *, processing_steps):
    TB, J, C = x_ref.shape
    f32 = jnp.float32
    bf16 = jnp.bfloat16

    def attend(q):
        # Content-based attention: softmax over the set ("job") dim J.
        # 3-D keepdims layout throughout -> no lane<->sublane relayout per step.
        x = x_ref[...]                                            # VMEM re-read (cheap)
        e = jnp.sum(x * q[:, None, :], axis=2, keepdims=True)     # [TB, J, 1]
        e_max = jnp.max(e, axis=1, keepdims=True)                 # [TB, 1, 1]
        p = jnp.exp(e - e_max)                                    # [TB, J, 1]
        denom = jnp.sum(p, axis=1, keepdims=True)[:, 0, :]        # [TB, 1]
        # Exact reciprocal: r feeds back through the LSTM, so approx-reciprocal
        # error would compound across processing steps.
        return jnp.sum(p * x, axis=1) * pl.reciprocal(denom)      # [TB, C]

    if processing_steps <= 0:
        q = jnp.zeros((TB, C), f32)
        r = jnp.zeros((TB, C), f32)
    else:
        wqh = [wqh_ref[g] for g in range(4)]                      # 4 x [C, C]
        wr = [wr_ref[g] for g in range(4)]                        # 4 x [C, C]
        # Gate-bias broadcasts hoisted out of the unrolled step loop.
        bg = [jnp.broadcast_to(bg_ref[g], (TB, C)) for g in range(4)]

        # Peeled step 0: q_star = h = c = 0, so every gate reduces to its bias and
        # h1 / c1 are constant rows precomputed in the wrapper.  No MXU work here.
        hc = init_ref[...]                                        # [2, C]
        h = jnp.broadcast_to(hc[0:1, :], (TB, C))
        c = jnp.broadcast_to(hc[1:2, :], (TB, C))
        q = h
        r = attend(q)

        def gate(g, qq, rr):
            # Two small MXU dots per gate: q == h for this module, so W_ih[:, :C]
            # and W_hh were folded together in the wrapper (12 -> 8 dots / step);
            # no lane concat of q_star, no sub-128-lane gate slicing.
            return (jnp.dot(qq, wqh[g], preferred_element_type=f32)
                    + jnp.dot(rr, wr[g], preferred_element_type=f32)
                    + bg[g])

        # processing_steps is a small static int -> unrolled at trace time.
        for _ in range(1, processing_steps):
            i_g = jax.nn.sigmoid(gate(0, q, r))
            f_g = jax.nn.sigmoid(gate(1, q, r))
            g_g = jnp.tanh(gate(2, q, r))
            o_g = jax.nn.sigmoid(gate(3, q, r))
            c = f_g * c + i_g * g_g
            h = o_g * jnp.tanh(c)
            q = h
            r = attend(q)

    # --- readout: Linear(3C->C) split as x-part + per-batch-row (q, r) part.
    # bf16 MXU operands / f32 accumulation; recurrent math above stays f32.
    t = (jnp.dot(q.astype(bf16), wq2_ref[...], preferred_element_type=f32)
         + jnp.dot(r.astype(bf16), wr2_ref[...], preferred_element_type=f32)
         + mlpb_ref[...])                                         # [TB, C]
    wx = wx_ref[...]                                              # [C, C] bf16
    xv = x_ref[...]                                               # [TB, J, C]
    pieces = []
    for j in range(J):
        yj = jnp.dot(xv[:, j, :].astype(bf16), wx,
                     preferred_element_type=f32) + t              # [TB, C]
        pieces.append(jnp.where(yj >= 0.0, yj, 0.01 * yj))        # leaky_relu(0.01)
    # Lane-dense store: C may be < 128, so pack the J per-row results along the
    # lane dim and write one dense [TB, J*C] slab (out array is [B, J*C]).
    out_ref[...] = jnp.concatenate(pieces, axis=-1).astype(out_ref.dtype)


def _pick_batch_tile(B, J, C, block_budget_bytes=8 * 1024 * 1024, max_tile=512):
    """Largest batch tile (multiple of 8) whose double-buffered x / out blocks fit
    a conservative VMEM budget, capped so the grid keeps >= 2 steps when B allows
    (megacore sharding / v7x's 2 TensorCores and smaller VMEM)."""
    row_bytes = 2 * 2 * J * C * 4         # (x + lane-dense out) x 2 pipeline buffers, f32
    tb = max(8, min(max_tile, (block_budget_bytes // row_bytes) // 8 * 8))
    if B > 8:
        tb = min(tb, ((B + 1) // 2 + 7) // 8 * 8)   # >= 2 grid steps
    return B if tb >= B else tb


def set2set_forward(x, params, processing_steps, batch_block=None):
    """x: [B, J, C] float32.  params = (w_ih, w_hh, b_ih, b_hh, mlp_w, mlp_b),
    i.e. PyTorch LSTM(2C->C, 1 layer) + Linear(3C->C) parameters."""
    B, J, C = x.shape
    w_ih, w_hh, b_ih, b_hh, mlp_w, mlp_b = params
    f32, bf16 = jnp.float32, jnp.bfloat16

    # --- parameter prep (tiny; plain XLA ops outside the kernel) --------------
    # LSTM weights per gate & per source, pre-transposed for x @ W.  The LSTM
    # output q IS the new hidden state h (seq_len == 1, num_layers == 1), so the
    # q-part of W_ih and W_hh are folded into one weight.
    wq = jnp.transpose(w_ih[:, :C].reshape(4, C, C), (0, 2, 1))
    wh = jnp.transpose(w_hh.reshape(4, C, C), (0, 2, 1))
    wqh = (wq + wh).astype(f32)                                    # [4, C, C]
    wr = jnp.transpose(w_ih[:, C:].reshape(4, C, C), (0, 2, 1)).astype(f32)
    bg = (b_ih + b_hh).reshape(4, 1, C).astype(f32)                # [4, 1, C]

    # Peeled LSTM step 0: all-zero inputs/state -> gates are pure biases, so the
    # first h/c are constant rows.  (Forget gate is irrelevant since c0 == 0.)
    bsum = (b_ih + b_hh).astype(f32)
    c1 = jax.nn.sigmoid(bsum[0:C]) * jnp.tanh(bsum[2 * C:3 * C])
    h1 = jax.nn.sigmoid(bsum[3 * C:4 * C]) * jnp.tanh(c1)
    init_hc = jnp.stack([h1, c1], axis=0)                          # [2, C]

    # Readout Linear(3C->C) split into x / q / r contributions; bf16 MXU operands
    # (f32 accumulation inside the kernel).  Recurrent gate weights stay f32.
    wx = jnp.transpose(mlp_w[:, :C]).astype(bf16)                  # [C, C]
    wq2 = jnp.transpose(mlp_w[:, C:2 * C]).astype(bf16)            # [C, C]
    wr2 = jnp.transpose(mlp_w[:, 2 * C:]).astype(bf16)             # [C, C]
    mlp_b2 = mlp_b.reshape(1, C).astype(f32)                       # [1, C]

    # --- tiling ----------------------------------------------------------------
    if batch_block is None:
        tb = _pick_batch_tile(B, J, C)
    else:
        tb = B if batch_block >= B else max(8, (batch_block // 8) * 8)
    grid = (pl.cdiv(B, tb),)

    # Explicit VMEM budget (v7x: 64 MiB physical / 32 MiB default scoped VMEM).
    est = (2 * 2 * tb * J * C * 4                     # x + lane-dense out blocks, double-buffered
           + 2 * (8 * C * C + 7 * C) * 4              # LSTM weights / biases / peeled init (f32)
           + 2 * (3 * C * C) * 2 + 4 * C)             # readout weights (bf16) + bias
    vmem_limit = int(max(32 * 2 ** 20, min(96 * 2 ** 20, 2 * est)))

    def weight_spec(shape):
        idx = lambda b: (0,) * len(shape)
        if C >= 256:
            # Grid-invariant weights: single-buffer them once they start to matter
            # for the VMEM budget (v7x).
            return pl.BlockSpec(shape, idx, pipeline_mode=pl.Buffered(1))
        return pl.BlockSpec(shape, idx)

    kernel = functools.partial(_set2set_kernel, processing_steps=processing_steps)
    out_flat = pl.pallas_call(
        kernel,
        out_shape=jax.ShapeDtypeStruct((B, J * C), x.dtype),       # lane-dense output
        grid=grid,
        in_specs=[
            pl.BlockSpec((tb, J, C), lambda b: (b, 0, 0)),         # x: batch-tiled
            weight_spec((2, C)),                                   # peeled-step h1/c1
            weight_spec((4, C, C)),                                # W_{q+h} per gate
            weight_spec((4, C, C)),                                # W_r per gate
            weight_spec((4, 1, C)),                                # gate biases
            weight_spec((C, C)),                                   # readout W_x (bf16)
            weight_spec((C, C)),                                   # readout W_q (bf16)
            weight_spec((C, C)),                                   # readout W_r (bf16)
            weight_spec((1, C)),                                   # readout bias
        ],
        out_specs=pl.BlockSpec((tb, J * C), lambda b: (b, 0)),
        compiler_params=pltpu.CompilerParams(
            dimension_semantics=("parallel",),
            vmem_limit_bytes=vmem_limit),
    )(x, init_hc, wqh, wr, bg, wx, wq2, wr2, mlp_b2)
    return out_flat.reshape(B, J, C)


def _reference_forward(x, params, processing_steps):
    """Pure-JAX reference mirroring the PyTorch module (exact softmax divide)."""
    w_ih, w_hh, b_ih, b_hh, mlp_w, mlp_b = params
    B, J, C = x.shape
    h = jnp.zeros((B, C), jnp.float32)
    c = jnp.zeros((B, C), jnp.float32)
    q_star = jnp.zeros((B, 2 * C), jnp.float32)
    for _ in range(processing_steps):
        gates = q_star @ w_ih.T + h @ w_hh.T + b_ih + b_hh
        i_g = jax.nn.sigmoid(gates[:, 0:C])
        f_g = jax.nn.sigmoid(gates[:, C:2 * C])
        g_g = jnp.tanh(gates[:, 2 * C:3 * C])
        o_g = jax.nn.sigmoid(gates[:, 3 * C:4 * C])
        c = f_g * c + i_g * g_g
        h = o_g * jnp.tanh(c)
        q = h
        e = jnp.sum(x * q[:, None, :], axis=2)
        a = jax.nn.softmax(e, axis=1)
        r = jnp.sum(a[:, :, None] * x, axis=1)
        q_star = jnp.concatenate([q, r], axis=-1)
    qs = jnp.broadcast_to(q_star[:, None, :], (B, J, 2 * C))
    cat = jnp.concatenate([x, qs], axis=2)
    y = jnp.einsum('bjd,od->bjo', cat, mlp_w) + mlp_b
    return jnp.where(y >= 0.0, y, 0.01 * y)


def _make_inputs(key, B, J, C):
    ks = jax.random.split(key, 7)
    x = jax.random.normal(ks[0], (B, J, C), dtype=jnp.float32)
    s_lstm = 1.0 / (C ** 0.5)
    w_ih = jax.random.uniform(ks[1], (4 * C, 2 * C), jnp.float32, -s_lstm, s_lstm)
    w_hh = jax.random.uniform(ks[2], (4 * C, C), jnp.float32, -s_lstm, s_lstm)
    b_ih = jax.random.uniform(ks[3], (4 * C,), jnp.float32, -s_lstm, s_lstm)
    b_hh = jax.random.uniform(ks[4], (4 * C,), jnp.float32, -s_lstm, s_lstm)
    s_mlp = 1.0 / ((3 * C) ** 0.5)
    mlp_w = jax.random.uniform(ks[5], (C, 3 * C), jnp.float32, -s_mlp, s_mlp)
    mlp_b = jax.random.uniform(ks[6], (C,), jnp.float32, -s_mlp, s_mlp)
    return x, (w_ih, w_hh, b_ih, b_hh, mlp_w, mlp_b)


if __name__ == "__main__":
    processing_steps = 3

    # Small config matching the module (batch, job-set size, in_channels).
    x, params = _make_inputs(jax.random.PRNGKey(0), B=2, J=8, C=32)
    out = jax.block_until_ready(set2set_forward(x, params, processing_steps))
    ref = _reference_forward(x, params, processing_steps)
    assert out.shape == (2, 8, 32)
    # Tolerance covers the bf16 MXU operands in the readout GEMM.
    assert jnp.allclose(out, ref, atol=2e-2, rtol=2e-2), "mismatch vs reference (B=2)"

    # Multi-tile + partial-last-tile check: B=20 picks a batch tile of 16, so the
    # grid has 2 steps and the last block's out-of-bounds rows are masked on
    # writeback (review correctness concern).
    x2, params2 = _make_inputs(jax.random.PRNGKey(1), B=20, J=8, C=32)
    out2 = jax.block_until_ready(set2set_forward(x2, params2, processing_steps))
    ref2 = _reference_forward(x2, params2, processing_steps)
    assert out2.shape == (20, 8, 32)
    assert jnp.allclose(out2, ref2, atol=2e-2, rtol=2e-2), "mismatch vs reference (B=20)"

    print("KERNEL_OK")
</pallas_src>

<mosaic_0001>
module attributes {stable_mosaic.version = 11 : i64} {
  func.func @_set2set_kernel(%arg0: i32, %arg1: memref<2x8x32xf32, #tpu.memory_space<vmem>>, %arg2: memref<2x32xf32, #tpu.memory_space<vmem>>, %arg3: memref<4x32x32xf32, #tpu.memory_space<vmem>>, %arg4: memref<4x32x32xf32, #tpu.memory_space<vmem>>, %arg5: memref<4x1x32xf32, #tpu.memory_space<vmem>>, %arg6: memref<32x32xbf16, #tpu.memory_space<vmem>>, %arg7: memref<32x32xbf16, #tpu.memory_space<vmem>>, %arg8: memref<32x32xbf16, #tpu.memory_space<vmem>>, %arg9: memref<1x32xf32, #tpu.memory_space<vmem>>, %arg10: memref<2x256xf32, #tpu.memory_space<vmem>>) attributes {dimension_semantics = [#tpu.dimension_semantics<parallel>], iteration_bounds = array<i64: 1>, scalar_prefetch = 0 : i64, scratch_operands = 0 : i64, tpu.core_type = #tpu.core_type<tc>, window_params = [{transform_indices = @transform_0, window_bounds = array<i64: 2, 8, 32>}, {pipeline_mode = #tpu.pipeline_mode<synchronous>, transform_indices = @transform_1, window_bounds = array<i64: 2, 32>}, {pipeline_mode = #tpu.pipeline_mode<synchronous>, transform_indices = @transform_2, window_bounds = array<i64: 4, 32, 32>}, {pipeline_mode = #tpu.pipeline_mode<synchronous>, transform_indices = @transform_3, window_bounds = array<i64: 4, 32, 32>}, {pipeline_mode = #tpu.pipeline_mode<synchronous>, transform_indices = @transform_4, window_bounds = array<i64: 4, 1, 32>}, {pipeline_mode = #tpu.pipeline_mode<synchronous>, transform_indices = @transform_5, window_bounds = array<i64: 32, 32>}, {pipeline_mode = #tpu.pipeline_mode<synchronous>, transform_indices = @transform_6, window_bounds = array<i64: 32, 32>}, {pipeline_mode = #tpu.pipeline_mode<synchronous>, transform_indices = @transform_7, window_bounds = array<i64: 32, 32>}, {pipeline_mode = #tpu.pipeline_mode<synchronous>, transform_indices = @transform_8, window_bounds = array<i64: 1, 32>}, {transform_indices = @transform_9, window_bounds = array<i64: 2, 256>}]} {
    %c0 = arith.constant 0 : index
    %c0_0 = arith.constant 0 : index
    %c0_1 = arith.constant 0 : index
    %0 = vector.load %arg3[%c0, %c0_0, %c0_1] : memref<4x32x32xf32, #tpu.memory_space<vmem>>, vector<1x32x32xf32>
    %1 = vector.shape_cast %0 : vector<1x32x32xf32> to vector<32x32xf32>
    %c1 = arith.constant 1 : index
    %c0_2 = arith.constant 0 : index
    %c0_3 = arith.constant 0 : index
    %2 = vector.load %arg3[%c1, %c0_2, %c0_3] : memref<4x32x32xf32, #tpu.memory_space<vmem>>, vector<1x32x32xf32>
    %3 = vector.shape_cast %2 : vector<1x32x32xf32> to vector<32x32xf32>
    %c2 = arith.constant 2 : index
    %c0_4 = arith.constant 0 : index
    %c0_5 = arith.constant 0 : index
    %4 = vector.load %arg3[%c2, %c0_4, %c0_5] : memref<4x32x32xf32, #tpu.memory_space<vmem>>, vector<1x32x32xf32>
    %5 = vector.shape_cast %4 : vector<1x32x32xf32> to vector<32x32xf32>
    %c3 = arith.constant 3 : index
    %c0_6 = arith.constant 0 : index
    %c0_7 = arith.constant 0 : index
    %6 = vector.load %arg3[%c3, %c0_6, %c0_7] : memref<4x32x32xf32, #tpu.memory_space<vmem>>, vector<1x32x32xf32>
    %7 = vector.shape_cast %6 : vector<1x32x32xf32> to vector<32x32xf32>
    %c0_8 = arith.constant 0 : index
    %c0_9 = arith.constant 0 : index
    %c0_10 = arith.constant 0 : index
    %8 = vector.load %arg4[%c0_8, %c0_9, %c0_10] : memref<4x32x32xf32, #tpu.memory_space<vmem>>, vector<1x32x32xf32>
    %9 = vector.shape_cast %8 : vector<1x32x32xf32> to vector<32x32xf32>
    %c1_11 = arith.constant 1 : index
    %c0_12 = arith.constant 0 : index
    %c0_13 = arith.constant 0 : index
    %10 = vector.load %arg4[%c1_11, %c0_12, %c0_13] : memref<4x32x32xf32, #tpu.memory_space<vmem>>, vector<1x32x32xf32>
    %11 = vector.shape_cast %10 : vector<1x32x32xf32> to vector<32x32xf32>
    %c2_14 = arith.constant 2 : index
    %c0_15 = arith.constant 0 : index
    %c0_16 = arith.constant 0 : index
    %12 = vector.load %arg4[%c2_14, %c0_15, %c0_16] : memref<4x32x32xf32, #tpu.memory_space<vmem>>, vector<1x32x32xf32>
    %13 = vector.shape_cast %12 : vector<1x32x32xf32> to vector<32x32xf32>
    %c3_17 = arith.constant 3 : index
    %c0_18 = arith.constant 0 : index
    %c0_19 = arith.constant 0 : index
    %14 = vector.load %arg4[%c3_17, %c0_18, %c0_19] : memref<4x32x32xf32, #tpu.memory_space<vmem>>, vector<1x32x32xf32>
    %15 = vector.shape_cast %14 : vector<1x32x32xf32> to vector<32x32xf32>
    %c0_20 = arith.constant 0 : index
    %c0_21 = arith.constant 0 : index
    %c0_22 = arith.constant 0 : index
    %16 = vector.load %arg5[%c0_20, %c0_21, %c0_22] : memref<4x1x32xf32, #tpu.memory_space<vmem>>, vector<1x1x32xf32>
    %17 = vector.shape_cast %16 : vector<1x1x32xf32> to vector<1x32xf32>
    %18 = vector.shape_cast %17 : vector<1x32xf32> to vector<1x32xf32>
    %19 = vector.broadcast %18 : vector<1x32xf32> to vector<2x32xf32>
    %c1_23 = arith.constant 1 : index
    %c0_24 = arith.constant 0 : index
    %c0_25 = arith.constant 0 : index
    %20 = vector.load %arg5[%c1_23, %c0_24, %c0_25] : memref<4x1x32xf32, #tpu.memory_space<vmem>>, vector<1x1x32xf32>
    %21 = vector.shape_cast %20 : vector<1x1x32xf32> to vector<1x32xf32>
    %22 = vector.shape_cast %21 : vector<1x32xf32> to vector<1x32xf32>
    %23 = vector.broadcast %22 : vector<1x32xf32> to vector<2x32xf32>
    %c2_26 = arith.constant 2 : index
    %c0_27 = arith.constant 0 : index
    %c0_28 = arith.constant 0 : index
    %24 = vector.load %arg5[%c2_26, %c0_27, %c0_28] : memref<4x1x32xf32, #tpu.memory_space<vmem>>, vector<1x1x32xf32>
    %25 = vector.shape_cast %24 : vector<1x1x32xf32> to vector<1x32xf32>
    %26 = vector.shape_cast %25 : vector<1x32xf32> to vector<1x32xf32>
    %27 = vector.broadcast %26 : vector<1x32xf32> to vector<2x32xf32>
    %c3_29 = arith.constant 3 : index
    %c0_30 = arith.constant 0 : index
    %c0_31 = arith.constant 0 : index
    %28 = vector.load %arg5[%c3_29, %c0_30, %c0_31] : memref<4x1x32xf32, #tpu.memory_space<vmem>>, vector<1x1x32xf32>
    %29 = vector.shape_cast %28 : vector<1x1x32xf32> to vector<1x32xf32>
    %30 = vector.shape_cast %29 : vector<1x32xf32> to vector<1x32xf32>
    %31 = vector.broadcast %30 : vector<1x32xf32> to vector<2x32xf32>
    %c0_32 = arith.constant 0 : index
    %c0_33 = arith.constant 0 : index
    %32 = vector.load %arg2[%c0_32, %c0_33] : memref<2x32xf32, #tpu.memory_space<vmem>>, vector<2x32xf32>
    %33 = vector.extract_strided_slice %32 {offsets = [0, 0], sizes = [1, 32], strides = [1, 1]} : vector<2x32xf32> to vector<1x32xf32>
    %34 = vector.shape_cast %33 : vector<1x32xf32> to vector<1x32xf32>
    %35 = vector.broadcast %34 : vector<1x32xf32> to vector<2x32xf32>
    %36 = vector.extract_strided_slice %32 {offsets = [1, 0], sizes = [1, 32], strides = [1, 1]} : vector<2x32xf32> to vector<1x32xf32>
    %37 = vector.shape_cast %36 : vector<1x32xf32> to vector<1x32xf32>
    %38 = vector.broadcast %37 : vector<1x32xf32> to vector<2x32xf32>
    %c0_34 = arith.constant 0 : index
    %c0_35 = arith.constant 0 : index
    %c0_36 = arith.constant 0 : index
    %39 = vector.load %arg1[%c0_34, %c0_35, %c0_36] : memref<2x8x32xf32, #tpu.memory_space<vmem>>, vector<2x8x32xf32>
    %40 = vector.shape_cast %35 : vector<2x32xf32> to vector<2x1x32xf32>
    %41 = vector.broadcast %40 : vector<2x1x32xf32> to vector<2x8x32xf32>
    %42 = arith.mulf %39, %41 : vector<2x8x32xf32>
    %cst = arith.constant dense<0.000000e+00> : vector<2x8xf32>
    %43 = vector.multi_reduction <add>, %42, %cst [2] : vector<2x8x32xf32> to vector<2x8xf32>
    %44 = vector.shape_cast %43 : vector<2x8xf32> to vector<2x8x1xf32>
    %cst_37 = arith.constant dense<0xFF800000> : vector<2x1xf32>
    %45 = vector.multi_reduction <maximumf>, %44, %cst_37 [1] : vector<2x8x1xf32> to vector<2x1xf32>
    %46 = vector.shape_cast %45 : vector<2x1xf32> to vector<2x1x1xf32>
    %47 = vector.broadcast %46 : vector<2x1x1xf32> to vector<2x8x1xf32>
    %48 = arith.subf %44, %47 : vector<2x8x1xf32>
    %49 = math.exp %48 : vector<2x8x1xf32>
    %cst_38 = arith.constant dense<0.000000e+00> : vector<2x1xf32>
    %50 = vector.multi_reduction <add>, %49, %cst_38 [1] : vector<2x8x1xf32> to vector<2x1xf32>
    %51 = vector.shape_cast %50 : vector<2x1xf32> to vector<2x1x1xf32>
    %52 = vector.shape_cast %51 : vector<2x1x1xf32> to vector<2x1xf32>
    %53 = vector.broadcast %49 : vector<2x8x1xf32> to vector<2x8x32xf32>
    %54 = arith.mulf %53, %39 : vector<2x8x32xf32>
    %cst_39 = arith.constant dense<0.000000e+00> : vector<2x32xf32>
    %55 = vector.multi_reduction <add>, %54, %cst_39 [1] : vector<2x8x32xf32> to vector<2x32xf32>
    %56 = tpu.reciprocal %52 : vector<2x1xf32> -> vector<2x1xf32>
    %57 = vector.broadcast %56 : vector<2x1xf32> to vector<2x32xf32>
    %58 = arith.mulf %55, %57 : vector<2x32xf32>
    %cst_40 = arith.constant dense<0.000000e+00> : vector<2x32xf32>
    %59 = tpu.matmul %35, %1, %cst_40 {dimension_numbers = #tpu.dot_dimension_numbers<[1], [0], [0], [1], [0, 0, 1, 1], [], []>} : vector<2x32xf32>, vector<32x32xf32>, vector<2x32xf32> -> vector<2x32xf32>
    %cst_41 = arith.constant dense<0.000000e+00> : vector<2x32xf32>
    %60 = tpu.matmul %58, %9, %cst_41 {dimension_numbers = #tpu.dot_dimension_numbers<[1], [0], [0], [1], [0, 0, 1, 1], [], []>} : vector<2x32xf32>, vector<32x32xf32>, vector<2x32xf32> -> vector<2x32xf32>
    %61 = arith.addf %59, %60 : vector<2x32xf32>
    %62 = arith.addf %61, %19 : vector<2x32xf32>
    %63 = arith.negf %62 : vector<2x32xf32>
    %64 = math.exp %63 : vector<2x32xf32>
    %cst_42 = arith.constant 1.000000e+00 : f32
    %65 = vector.broadcast %cst_42 : f32 to vector<2x32xf32>
    %66 = arith.addf %65, %64 : vector<2x32xf32>
    %67 = arith.divf %65, %66 : vector<2x32xf32>
    %cst_43 = arith.constant dense<0.000000e+00> : vector<2x32xf32>
    %68 = tpu.matmul %35, %3, %cst_43 {dimension_numbers = #tpu.dot_dimension_numbers<[1], [0], [0], [1], [0, 0, 1, 1], [], []>} : vector<2x32xf32>, vector<32x32xf32>, vector<2x32xf32> -> vector<2x32xf32>
    %cst_44 = arith.constant dense<0.000000e+00> : vector<2x32xf32>
    %69 = tpu.matmul %58, %11, %cst_44 {dimension_numbers = #tpu.dot_dimension_numbers<[1], [0], [0], [1], [0, 0, 1, 1], [], []>} : vector<2x32xf32>, vector<32x32xf32>, vector<2x32xf32> -> vector<2x32xf32>
    %70 = arith.addf %68, %69 : vector<2x32xf32>
    %71 = arith.addf %70, %23 : vector<2x32xf32>
    %72 = arith.negf %71 : vector<2x32xf32>
    %73 = math.exp %72 : vector<2x32xf32>
    %cst_45 = arith.constant 1.000000e+00 : f32
    %74 = vector.broadcast %cst_45 : f32 to vector<2x32xf32>
    %75 = arith.addf %74, %73 : vector<2x32xf32>
    %76 = arith.divf %74, %75 : vector<2x32xf32>
    %cst_46 = arith.constant dense<0.000000e+00> : vector<2x32xf32>
    %77 = tpu.matmul %35, %5, %cst_46 {dimension_numbers = #tpu.dot_dimension_numbers<[1], [0], [0], [1], [0, 0, 1, 1], [], []>} : vector<2x32xf32>, vector<32x32xf32>, vector<2x32xf32> -> vector<2x32xf32>
    %cst_47 = arith.constant dense<0.000000e+00> : vector<2x32xf32>
    %78 = tpu.matmul %58, %13, %cst_47 {dimension_numbers = #tpu.dot_dimension_numbers<[1], [0], [0], [1], [0, 0, 1, 1], [], []>} : vector<2x32xf32>, vector<32x32xf32>, vector<2x32xf32> -> vector<2x32xf32>
    %79 = arith.addf %77, %78 : vector<2x32xf32>
    %80 = arith.addf %79, %27 : vector<2x32xf32>
    %81 = math.tanh %80 : vector<2x32xf32>
    %cst_48 = arith.constant dense<0.000000e+00> : vector<2x32xf32>
    %82 = tpu.matmul %35, %7, %cst_48 {dimension_numbers = #tpu.dot_dimension_numbers<[1], [0], [0], [1], [0, 0, 1, 1], [], []>} : vector<2x32xf32>, vector<32x32xf32>, vector<2x32xf32> -> vector<2x32xf32>
    %cst_49 = arith.constant dense<0.000000e+00> : vector<2x32xf32>
    %83 = tpu.matmul %58, %15, %cst_49 {dimension_numbers = #tpu.dot_dimension_numbers<[1], [0], [0], [1], [0, 0, 1, 1], [], []>} : vector<2x32xf32>, vector<32x32xf32>, vector<2x32xf32> -> vector<2x32xf32>
    %84 = arith.addf %82, %83 : vector<2x32xf32>
    %85 = arith.addf %84, %31 : vector<2x32xf32>
    %86 = arith.negf %85 : vector<2x32xf32>
    %87 = math.exp %86 : vector<2x32xf32>
    %cst_50 = arith.constant 1.000000e+00 : f32
    %88 = vector.broadcast %cst_50 : f32 to vector<2x32xf32>
    %89 = arith.addf %88, %87 : vector<2x32xf32>
    %90 = arith.divf %88, %89 : vector<2x32xf32>
    %91 = arith.mulf %76, %38 : vector<2x32xf32>
    %92 = arith.mulf %67, %81 : vector<2x32xf32>
    %93 = arith.addf %91, %92 : vector<2x32xf32>
    %94 = math.tanh %93 : vector<2x32xf32>
    %95 = arith.mulf %90, %94 : vector<2x32xf32>
    %c0_51 = arith.constant 0 : index
    %c0_52 = arith.constant 0 : index
    %c0_53 = arith.constant 0 : index
    %96 = vector.load %arg1[%c0_51, %c0_52, %c0_53] : memref<2x8x32xf32, #tpu.memory_space<vmem>>, vector<2x8x32xf32>
    %97 = vector.shape_cast %95 : vector<2x32xf32> to vector<2x1x32xf32>
    %98 = vector.broadcast %97 : vector<2x1x32xf32> to vector<2x8x32xf32>
    %99 = arith.mulf %96, %98 : vector<2x8x32xf32>
    %cst_54 = arith.constant dense<0.000000e+00> : vector<2x8xf32>
    %100 = vector.multi_reduction <add>, %99, %cst_54 [2] : vector<2x8x32xf32> to vector<2x8xf32>
    %101 = vector.shape_cast %100 : vector<2x8xf32> to vector<2x8x1xf32>
    %cst_55 = arith.constant dense<0xFF800000> : vector<2x1xf32>
    %102 = vector.multi_reduction <maximumf>, %101, %cst_55 [1] : vector<2x8x1xf32> to vector<2x1xf32>
    %103 = vector.shape_cast %102 : vector<2x1xf32> to vector<2x1x1xf32>
    %104 = vector.broadcast %103 : vector<2x1x1xf32> to vector<2x8x1xf32>
    %105 = arith.subf %101, %104 : vector<2x8x1xf32>
    %106 = math.exp %105 : vector<2x8x1xf32>
    %cst_56 = arith.constant dense<0.000000e+00> : vector<2x1xf32>
    %107 = vector.multi_reduction <add>, %106, %cst_56 [1] : vector<2x8x1xf32> to vector<2x1xf32>
    %108 = vector.shape_cast %107 : vector<2x1xf32> to vector<2x1x1xf32>
    %109 = vector.shape_cast %108 : vector<2x1x1xf32> to vector<2x1xf32>
    %110 = vector.broadcast %106 : vector<2x8x1xf32> to vector<2x8x32xf32>
    %111 = arith.mulf %110, %96 : vector<2x8x32xf32>
    %cst_57 = arith.constant dense<0.000000e+00> : vector<2x32xf32>
    %112 = vector.multi_reduction <add>, %111, %cst_57 [1] : vector<2x8x32xf32> to vector<2x32xf32>
    %113 = tpu.reciprocal %109 : vector<2x1xf32> -> vector<2x1xf32>
    %114 = vector.broadcast %113 : vector<2x1xf32> to vector<2x32xf32>
    %115 = arith.mulf %112, %114 : vector<2x32xf32>
    %cst_58 = arith.constant dense<0.000000e+00> : vector<2x32xf32>
    %116 = tpu.matmul %95, %1, %cst_58 {dimension_numbers = #tpu.dot_dimension_numbers<[1], [0], [0], [1], [0, 0, 1, 1], [], []>} : vector<2x32xf32>, vector<32x32xf32>, vector<2x32xf32> -> vector<2x32xf32>
    %cst_59 = arith.constant dense<0.000000e+00> : vector<2x32xf32>
    %117 = tpu.matmul %115, %9, %cst_59 {dimension_numbers = #tpu.dot_dimension_numbers<[1], [0], [0], [1], [0, 0, 1, 1], [], []>} : vector<2x32xf32>, vector<32x32xf32>, vector<2x32xf32> -> vector<2x32xf32>
    %118 = arith.addf %116, %117 : vector<2x32xf32>
    %119 = arith.addf %118, %19 : vector<2x32xf32>
    %120 = arith.negf %119 : vector<2x32xf32>
    %121 = math.exp %120 : vector<2x32xf32>
    %cst_60 = arith.constant 1.000000e+00 : f32
    %122 = vector.broadcast %cst_60 : f32 to vector<2x32xf32>
    %123 = arith.addf %122, %121 : vector<2x32xf32>
    %124 = arith.divf %122, %123 : vector<2x32xf32>
    %cst_61 = arith.constant dense<0.000000e+00> : vector<2x32xf32>
    %125 = tpu.matmul %95, %3, %cst_61 {dimension_numbers = #tpu.dot_dimension_numbers<[1], [0], [0], [1], [0, 0, 1, 1], [], []>} : vector<2x32xf32>, vector<32x32xf32>, vector<2x32xf32> -> vector<2x32xf32>
    %cst_62 = arith.constant dense<0.000000e+00> : vector<2x32xf32>
    %126 = tpu.matmul %115, %11, %cst_62 {dimension_numbers = #tpu.dot_dimension_numbers<[1], [0], [0], [1], [0, 0, 1, 1], [], []>} : vector<2x32xf32>, vector<32x32xf32>, vector<2x32xf32> -> vector<2x32xf32>
    %127 = arith.addf %125, %126 : vector<2x32xf32>
    %128 = arith.addf %127, %23 : vector<2x32xf32>
    %129 = arith.negf %128 : vector<2x32xf32>
    %130 = math.exp %129 : vector<2x32xf32>
    %cst_63 = arith.constant 1.000000e+00 : f32
    %131 = vector.broadcast %cst_63 : f32 to vector<2x32xf32>
    %132 = arith.addf %131, %130 : vector<2x32xf32>
    %133 = arith.divf %131, %132 : vector<2x32xf32>
    %cst_64 = arith.constant dense<0.000000e+00> : vector<2x32xf32>
    %134 = tpu.matmul %95, %5, %cst_64 {dimension_numbers = #tpu.dot_dimension_numbers<[1], [0], [0], [1], [0, 0, 1, 1], [], []>} : vector<2x32xf32>, vector<32x32xf32>, vector<2x32xf32> -> vector<2x32xf32>
    %cst_65 = arith.constant dense<0.000000e+00> : vector<2x32xf32>
    %135 = tpu.matmul %115, %13, %cst_65 {dimension_numbers = #tpu.dot_dimension_numbers<[1], [0], [0], [1], [0, 0, 1, 1], [], []>} : vector<2x32xf32>, vector<32x32xf32>, vector<2x32xf32> -> vector<2x32xf32>
    %136 = arith.addf %134, %135 : vector<2x32xf32>
    %137 = arith.addf %136, %27 : vector<2x32xf32>
    %138 = math.tanh %137 : vector<2x32xf32>
    %cst_66 = arith.constant dense<0.000000e+00> : vector<2x32xf32>
    %139 = tpu.matmul %95, %7, %cst_66 {dimension_numbers = #tpu.dot_dimension_numbers<[1], [0], [0], [1], [0, 0, 1, 1], [], []>} : vector<2x32xf32>, vector<32x32xf32>, vector<2x32xf32> -> vector<2x32xf32>
    %cst_67 = arith.constant dense<0.000000e+00> : vector<2x32xf32>
    %140 = tpu.matmul %115, %15, %cst_67 {dimension_numbers = #tpu.dot_dimension_numbers<[1], [0], [0], [1], [0, 0, 1, 1], [], []>} : vector<2x32xf32>, vector<32x32xf32>, vector<2x32xf32> -> vector<2x32xf32>
    %141 = arith.addf %139, %140 : vector<2x32xf32>
    %142 = arith.addf %141, %31 : vector<2x32xf32>
    %143 = arith.negf %142 : vector<2x32xf32>
    %144 = math.exp %143 : vector<2x32xf32>
    %cst_68 = arith.constant 1.000000e+00 : f32
    %145 = vector.broadcast %cst_68 : f32 to vector<2x32xf32>
    %146 = arith.addf %145, %144 : vector<2x32xf32>
    %147 = arith.divf %145, %146 : vector<2x32xf32>
    %148 = arith.mulf %133, %93 : vector<2x32xf32>
    %149 = arith.mulf %124, %138 : vector<2x32xf32>
    %150 = arith.addf %148, %149 : vector<2x32xf32>
    %151 = math.tanh %150 : vector<2x32xf32>
    %152 = arith.mulf %147, %151 : vector<2x32xf32>
    %c0_69 = arith.constant 0 : index
    %c0_70 = arith.constant 0 : index
    %c0_71 = arith.constant 0 : index
    %153 = vector.load %arg1[%c0_69, %c0_70, %c0_71] : memref<2x8x32xf32, #tpu.memory_space<vmem>>, vector<2x8x32xf32>
    %154 = vector.shape_cast %152 : vector<2x32xf32> to vector<2x1x32xf32>
    %155 = vector.broadcast %154 : vector<2x1x32xf32> to vector<2x8x32xf32>
    %156 = arith.mulf %153, %155 : vector<2x8x32xf32>
    %cst_72 = arith.constant dense<0.000000e+00> : vector<2x8xf32>
    %157 = vector.multi_reduction <add>, %156, %cst_72 [2] : vector<2x8x32xf32> to vector<2x8xf32>
    %158 = vector.shape_cast %157 : vector<2x8xf32> to vector<2x8x1xf32>
    %cst_73 = arith.constant dense<0xFF800000> : vector<2x1xf32>
    %159 = vector.multi_reduction <maximumf>, %158, %cst_73 [1] : vector<2x8x1xf32> to vector<2x1xf32>
    %160 = vector.shape_cast %159 : vector<2x1xf32> to vector<2x1x1xf32>
    %161 = vector.broadcast %160 : vector<2x1x1xf32> to vector<2x8x1xf32>
    %162 = arith.subf %158, %161 : vector<2x8x1xf32>
    %163 = math.exp %162 : vector<2x8x1xf32>
    %cst_74 = arith.constant dense<0.000000e+00> : vector<2x1xf32>
    %164 = vector.multi_reduction <add>, %163, %cst_74 [1] : vector<2x8x1xf32> to vector<2x1xf32>
    %165 = vector.shape_cast %164 : vector<2x1xf32> to vector<2x1x1xf32>
    %166 = vector.shape_cast %165 : vector<2x1x1xf32> to vector<2x1xf32>
    %167 = vector.broadcast %163 : vector<2x8x1xf32> to vector<2x8x32xf32>
    %168 = arith.mulf %167, %153 : vector<2x8x32xf32>
    %cst_75 = arith.constant dense<0.000000e+00> : vector<2x32xf32>
    %169 = vector.multi_reduction <add>, %168, %cst_75 [1] : vector<2x8x32xf32> to vector<2x32xf32>
    %170 = tpu.reciprocal %166 : vector<2x1xf32> -> vector<2x1xf32>
    %171 = vector.broadcast %170 : vector<2x1xf32> to vector<2x32xf32>
    %172 = arith.mulf %169, %171 : vector<2x32xf32>
    %173 = arith.truncf %152 : vector<2x32xf32> to vector<2x32xbf16>
    %c0_76 = arith.constant 0 : index
    %c0_77 = arith.constant 0 : index
    %174 = vector.load %arg7[%c0_76, %c0_77] : memref<32x32xbf16, #tpu.memory_space<vmem>>, vector<32x32xbf16>
    %cst_78 = arith.constant dense<0.000000e+00> : vector<2x32xf32>
    %175 = tpu.matmul %173, %174, %cst_78 {dimension_numbers = #tpu.dot_dimension_numbers<[1], [0], [0], [1], [0, 0, 1, 1], [], []>} : vector<2x32xbf16>, vector<32x32xbf16>, vector<2x32xf32> -> vector<2x32xf32>
    %176 = arith.truncf %172 : vector<2x32xf32> to vector<2x32xbf16>
    %c0_79 = arith.constant 0 : index
    %c0_80 = arith.constant 0 : index
    %177 = vector.load %arg8[%c0_79, %c0_80] : memref<32x32xbf16, #tpu.memory_space<vmem>>, vector<32x32xbf16>
    %cst_81 = arith.constant dense<0.000000e+00> : vector<2x32xf32>
    %178 = tpu.matmul %176, %177, %cst_81 {dimension_numbers = #tpu.dot_dimension_numbers<[1], [0], [0], [1], [0, 0, 1, 1], [], []>} : vector<2x32xbf16>, vector<32x32xbf16>, vector<2x32xf32> -> vector<2x32xf32>
    %179 = arith.addf %175, %178 : vector<2x32xf32>
    %c0_82 = arith.constant 0 : index
    %c0_83 = arith.constant 0 : index
    %180 = vector.load %arg9[%c0_82, %c0_83] : memref<1x32xf32, #tpu.memory_space<vmem>>, vector<1x32xf32>
    %181 = vector.broadcast %180 : vector<1x32xf32> to vector<2x32xf32>
    %182 = arith.addf %179, %181 : vector<2x32xf32>
    %c0_84 = arith.constant 0 : index
    %c0_85 = arith.constant 0 : index
    %183 = vector.load %arg6[%c0_84, %c0_85] : memref<32x32xbf16, #tpu.memory_space<vmem>>, vector<32x32xbf16>
    %c0_86 = arith.constant 0 : index
    %c0_87 = arith.constant 0 : index
    %c0_88 = arith.constant 0 : index
    %184 = vector.load %arg1[%c0_86, %c0_87, %c0_88] : memref<2x8x32xf32, #tpu.memory_space<vmem>>, vector<2x8x32xf32>
    %185 = vector.extract_strided_slice %184 {offsets = [0, 0, 0], sizes = [2, 1, 32], strides = [1, 1, 1]} : vector<2x8x32xf32> to vector<2x1x32xf32>
    %186 = vector.shape_cast %185 : vector<2x1x32xf32> to vector<2x32xf32>
    %187 = arith.truncf %186 : vector<2x32xf32> to vector<2x32xbf16>
    %cst_89 = arith.constant dense<0.000000e+00> : vector<2x32xf32>
    %188 = tpu.matmul %187, %183, %cst_89 {dimension_numbers = #tpu.dot_dimension_numbers<[1], [0], [0], [1], [0, 0, 1, 1], [], []>} : vector<2x32xbf16>, vector<32x32xbf16>, vector<2x32xf32> -> vector<2x32xf32>
    %189 = arith.addf %188, %182 : vector<2x32xf32>
    %cst_90 = arith.constant 0.000000e+00 : f32
    %190 = vector.broadcast %cst_90 : f32 to vector<2x32xf32>
    %191 = arith.cmpf oge, %189, %190 : vector<2x32xf32>
    %cst_91 = arith.constant 0.00999999977 : f32
    %192 = vector.broadcast %cst_91 : f32 to vector<2x32xf32>
    %193 = arith.mulf %192, %189 : vector<2x32xf32>
    %194 = arith.select %191, %189, %193 : vector<2x32xi1>, vector<2x32xf32>
    %195 = vector.extract_strided_slice %184 {offsets = [0, 1, 0], sizes = [2, 1, 32], strides = [1, 1, 1]} : vector<2x8x32xf32> to vector<2x1x32xf32>
    %196 = vector.shape_cast %195 : vector<2x1x32xf32> to vector<2x32xf32>
    %197 = arith.truncf %196 : vector<2x32xf32> to vector<2x32xbf16>
    %cst_92 = arith.constant dense<0.000000e+00> : vector<2x32xf32>
    %198 = tpu.matmul %197, %183, %cst_92 {dimension_numbers = #tpu.dot_dimension_numbers<[1], [0], [0], [1], [0, 0, 1, 1], [], []>} : vector<2x32xbf16>, vector<32x32xbf16>, vector<2x32xf32> -> vector<2x32xf32>
    %199 = arith.addf %198, %182 : vector<2x32xf32>
    %cst_93 = arith.constant 0.000000e+00 : f32
    %200 = vector.broadcast %cst_93 : f32 to vector<2x32xf32>
    %201 = arith.cmpf oge, %199, %200 : vector<2x32xf32>
    %cst_94 = arith.constant 0.00999999977 : f32
    %202 = vector.broadcast %cst_94 : f32 to vector<2x32xf32>
    %203 = arith.mulf %202, %199 : vector<2x32xf32>
    %204 = arith.select %201, %199, %203 : vector<2x32xi1>, vector<2x32xf32>
    %205 = vector.extract_strided_slice %184 {offsets = [0, 2, 0], sizes = [2, 1, 32], strides = [1, 1, 1]} : vector<2x8x32xf32> to vector<2x1x32xf32>
    %206 = vector.shape_cast %205 : vector<2x1x32xf32> to vector<2x32xf32>
    %207 = arith.truncf %206 : vector<2x32xf32> to vector<2x32xbf16>
    %cst_95 = arith.constant dense<0.000000e+00> : vector<2x32xf32>
    %208 = tpu.matmul %207, %183, %cst_95 {dimension_numbers = #tpu.dot_dimension_numbers<[1], [0], [0], [1], [0, 0, 1, 1], [], []>} : vector<2x32xbf16>, vector<32x32xbf16>, vector<2x32xf32> -> vector<2x32xf32>
    %209 = arith.addf %208, %182 : vector<2x32xf32>
    %cst_96 = arith.constant 0.000000e+00 : f32
    %210 = vector.broadcast %cst_96 : f32 to vector<2x32xf32>
    %211 = arith.cmpf oge, %209, %210 : vector<2x32xf32>
    %cst_97 = arith.constant 0.00999999977 : f32
    %212 = vector.broadcast %cst_97 : f32 to vector<2x32xf32>
    %213 = arith.mulf %212, %209 : vector<2x32xf32>
    %214 = arith.select %211, %209, %213 : vector<2x32xi1>, vector<2x32xf32>
    %215 = vector.extract_strided_slice %184 {offsets = [0, 3, 0], sizes = [2, 1, 32], strides = [1, 1, 1]} : vector<2x8x32xf32> to vector<2x1x32xf32>
    %216 = vector.shape_cast %215 : vector<2x1x32xf32> to vector<2x32xf32>
    %217 = arith.truncf %216 : vector<2x32xf32> to vector<2x32xbf16>
    %cst_98 = arith.constant dense<0.000000e+00> : vector<2x32xf32>
    %218 = tpu.matmul %217, %183, %cst_98 {dimension_numbers = #tpu.dot_dimension_numbers<[1], [0], [0], [1], [0, 0, 1, 1], [], []>} : vector<2x32xbf16>, vector<32x32xbf16>, vector<2x32xf32> -> vector<2x32xf32>
    %219 = arith.addf %218, %182 : vector<2x32xf32>
    %cst_99 = arith.constant 0.000000e+00 : f32
    %220 = vector.broadcast %cst_99 : f32 to vector<2x32xf32>
    %221 = arith.cmpf oge, %219, %220 : vector<2x32xf32>
    %cst_100 = arith.constant 0.00999999977 : f32
    %222 = vector.broadcast %cst_100 : f32 to vector<2x32xf32>
    %223 = arith.mulf %222, %219 : vector<2x32xf32>
    %224 = arith.select %221, %219, %223 : vector<2x32xi1>, vector<2x32xf32>
    %225 = vector.extract_strided_slice %184 {offsets = [0, 4, 0], sizes = [2, 1, 32], strides = [1, 1, 1]} : vector<2x8x32xf32> to vector<2x1x32xf32>
    %226 = vector.shape_cast %225 : vector<2x1x32xf32> to vector<2x32xf32>
    %227 = arith.truncf %226 : vector<2x32xf32> to vector<2x32xbf16>
    %cst_101 = arith.constant dense<0.000000e+00> : vector<2x32xf32>
    %228 = tpu.matmul %227, %183, %cst_101 {dimension_numbers = #tpu.dot_dimension_numbers<[1], [0], [0], [1], [0, 0, 1, 1], [], []>} : vector<2x32xbf16>, vector<32x32xbf16>, vector<2x32xf32> -> vector<2x32xf32>
    %229 = arith.addf %228, %182 : vector<2x32xf32>
    %cst_102 = arith.constant 0.000000e+00 : f32
    %230 = vector.broadcast %cst_102 : f32 to vector<2x32xf32>
    %231 = arith.cmpf oge, %229, %230 : vector<2x32xf32>
    %cst_103 = arith.constant 0.00999999977 : f32
    %232 = vector.broadcast %cst_103 : f32 to vector<2x32xf32>
    %233 = arith.mulf %232, %229 : vector<2x32xf32>
    %234 = arith.select %231, %229, %233 : vector<2x32xi1>, vector<2x32xf32>
    %235 = vector.extract_strided_slice %184 {offsets = [0, 5, 0], sizes = [2, 1, 32], strides = [1, 1, 1]} : vector<2x8x32xf32> to vector<2x1x32xf32>
    %236 = vector.shape_cast %235 : vector<2x1x32xf32> to vector<2x32xf32>
    %237 = arith.truncf %236 : vector<2x32xf32> to vector<2x32xbf16>
    %cst_104 = arith.constant dense<0.000000e+00> : vector<2x32xf32>
    %238 = tpu.matmul %237, %183, %cst_104 {dimension_numbers = #tpu.dot_dimension_numbers<[1], [0], [0], [1], [0, 0, 1, 1], [], []>} : vector<2x32xbf16>, vector<32x32xbf16>, vector<2x32xf32> -> vector<2x32xf32>
    %239 = arith.addf %238, %182 : vector<2x32xf32>
    %cst_105 = arith.constant 0.000000e+00 : f32
    %240 = vector.broadcast %cst_105 : f32 to vector<2x32xf32>
    %241 = arith.cmpf oge, %239, %240 : vector<2x32xf32>
    %cst_106 = arith.constant 0.00999999977 : f32
    %242 = vector.broadcast %cst_106 : f32 to vector<2x32xf32>
    %243 = arith.mulf %242, %239 : vector<2x32xf32>
    %244 = arith.select %241, %239, %243 : vector<2x32xi1>, vector<2x32xf32>
    %245 = vector.extract_strided_slice %184 {offsets = [0, 6, 0], sizes = [2, 1, 32], strides = [1, 1, 1]} : vector<2x8x32xf32> to vector<2x1x32xf32>
    %246 = vector.shape_cast %245 : vector<2x1x32xf32> to vector<2x32xf32>
    %247 = arith.truncf %246 : vector<2x32xf32> to vector<2x32xbf16>
    %cst_107 = arith.constant dense<0.000000e+00> : vector<2x32xf32>
    %248 = tpu.matmul %247, %183, %cst_107 {dimension_numbers = #tpu.dot_dimension_numbers<[1], [0], [0], [1], [0, 0, 1, 1], [], []>} : vector<2x32xbf16>, vector<32x32xbf16>, vector<2x32xf32> -> vector<2x32xf32>
    %249 = arith.addf %248, %182 : vector<2x32xf32>
    %cst_108 = arith.constant 0.000000e+00 : f32
    %250 = vector.broadcast %cst_108 : f32 to vector<2x32xf32>
    %251 = arith.cmpf oge, %249, %250 : vector<2x32xf32>
    %cst_109 = arith.constant 0.00999999977 : f32
    %252 = vector.broadcast %cst_109 : f32 to vector<2x32xf32>
    %253 = arith.mulf %252, %249 : vector<2x32xf32>
    %254 = arith.select %251, %249, %253 : vector<2x32xi1>, vector<2x32xf32>
    %255 = vector.extract_strided_slice %184 {offsets = [0, 7, 0], sizes = [2, 1, 32], strides = [1, 1, 1]} : vector<2x8x32xf32> to vector<2x1x32xf32>
    %256 = vector.shape_cast %255 : vector<2x1x32xf32> to vector<2x32xf32>
    %257 = arith.truncf %256 : vector<2x32xf32> to vector<2x32xbf16>
    %cst_110 = arith.constant dense<0.000000e+00> : vector<2x32xf32>
    %258 = tpu.matmul %257, %183, %cst_110 {dimension_numbers = #tpu.dot_dimension_numbers<[1], [0], [0], [1], [0, 0, 1, 1], [], []>} : vector<2x32xbf16>, vector<32x32xbf16>, vector<2x32xf32> -> vector<2x32xf32>
    %259 = arith.addf %258, %182 : vector<2x32xf32>
    %cst_111 = arith.constant 0.000000e+00 : f32
    %260 = vector.broadcast %cst_111 : f32 to vector<2x32xf32>
    %261 = arith.cmpf oge, %259, %260 : vector<2x32xf32>
    %cst_112 = arith.constant 0.00999999977 : f32
    %262 = vector.broadcast %cst_112 : f32 to vector<2x32xf32>
    %263 = arith.mulf %262, %259 : vector<2x32xf32>
    %264 = arith.select %261, %259, %263 : vector<2x32xi1>, vector<2x32xf32>
    %265 = tpu.concatenate %194, %204, %214, %224, %234, %244, %254, %264 in 1 : vector<2x32xf32>, vector<2x32xf32>, vector<2x32xf32>, vector<2x32xf32>, vector<2x32xf32>, vector<2x32xf32>, vector<2x32xf32>, vector<2x32xf32> -> vector<2x256xf32>
    %c0_113 = arith.constant 0 : index
    %c0_114 = arith.constant 0 : index
    %266 = vector.load %arg10[%c0_113, %c0_114] : memref<2x256xf32, #tpu.memory_space<vmem>>, vector<2x256xf32>
    tpu.vector_store %arg10[%c0_113, %c0_114], %265 {strides = array<i32>} : memref<2x256xf32, #tpu.memory_space<vmem>>, vector<2x256xf32>,
    return
  }
  func.func @transform_0(%arg0: i32) -> (i32, i32, i32) {
    %c0_i32 = arith.constant 0 : i32
    %c0_i32_0 = arith.constant 0 : i32
    %c0_i32_1 = arith.constant 0 : i32
    return %arg0, %c0_i32, %c0_i32_0 : i32, i32, i32
  }
  func.func @transform_1(%arg0: i32) -> (i32, i32) {
    %c0_i32 = arith.constant 0 : i32
    %c0_i32_0 = arith.constant 0 : i32
    %c0_i32_1 = arith.constant 0 : i32
    return %c0_i32, %c0_i32_0 : i32, i32
  }
  func.func @transform_2(%arg0: i32) -> (i32, i32, i32) {
    %c0_i32 = arith.constant 0 : i32
    %c0_i32_0 = arith.constant 0 : i32
    %c0_i32_1 = arith.constant 0 : i32
    %c0_i32_2 = arith.constant 0 : i32
    return %c0_i32, %c0_i32_0, %c0_i32_1 : i32, i32, i32
  }
  func.func @transform_3(%arg0: i32) -> (i32, i32, i32) {
    %c0_i32 = arith.constant 0 : i32
    %c0_i32_0 = arith.constant 0 : i32
    %c0_i32_1 = arith.constant 0 : i32
    %c0_i32_2 = arith.constant 0 : i32
    return %c0_i32, %c0_i32_0, %c0_i32_1 : i32, i32, i32
  }
  func.func @transform_4(%arg0: i32) -> (i32, i32, i32) {
    %c0_i32 = arith.constant 0 : i32
    %c0_i32_0 = arith.constant 0 : i32
    %c0_i32_1 = arith.constant 0 : i32
    %c0_i32_2 = arith.constant 0 : i32
    return %c0_i32, %c0_i32_0, %c0_i32_1 : i32, i32, i32
  }
  func.func @transform_5(%arg0: i32) -> (i32, i32) {
    %c0_i32 = arith.constant 0 : i32
    %c0_i32_0 = arith.constant 0 : i32
    %c0_i32_1 = arith.constant 0 : i32
    return %c0_i32, %c0_i32_0 : i32, i32
  }
  func.func @transform_6(%arg0: i32) -> (i32, i32) {
    %c0_i32 = arith.constant 0 : i32
    %c0_i32_0 = arith.constant 0 : i32
    %c0_i32_1 = arith.constant 0 : i32
    return %c0_i32, %c0_i32_0 : i32, i32
  }
  func.func @transform_7(%arg0: i32) -> (i32, i32) {
    %c0_i32 = arith.constant 0 : i32
    %c0_i32_0 = arith.constant 0 : i32
    %c0_i32_1 = arith.constant 0 : i32
    return %c0_i32, %c0_i32_0 : i32, i32
  }
  func.func @transform_8(%arg0: i32) -> (i32, i32) {
    %c0_i32 = arith.constant 0 : i32
    %c0_i32_0 = arith.constant 0 : i32
    %c0_i32_1 = arith.constant 0 : i32
    return %c0_i32, %c0_i32_0 : i32, i32
  }
  func.func @transform_9(%arg0: i32) -> (i32, i32) {
    %c0_i32 = arith.constant 0 : i32
    %c0_i32_0 = arith.constant 0 : i32
    return %arg0, %c0_i32 : i32, i32
  }
}

</mosaic_0001>

<llo_original>
// kernel: tpu_custom_call.1
$region0: #{tpu_custom_call.1}
  #allocation0 [shape = 'u32[]', space=smem, size = 0x4, offset = 0x4, fixed_abs, tag = 'smem constant byte address 0x4 - core index']
  #allocation1 [shape = 'u32[144,128]{1,0:T(1,128)}', space=vmem, size = 0x12000, scoped, tag = 'internal scratch']
  %s0 = inlined_call_operand.hbm [shape: f32[2,8,32], index: 0, kind: input, shape index: {}]
  %s1 = inlined_call_operand.vmem [shape: f32[2,32], index: 1, kind: input, shape index: {}]
  %s2 = inlined_call_operand.hbm [shape: f32[4,32,32], index: 2, kind: input, shape index: {}]
  %s3 = inlined_call_operand.hbm [shape: f32[4,32,32], index: 3, kind: input, shape index: {}]
  %s4 = inlined_call_operand.hbm [shape: f32[4,1,32], index: 4, kind: input, shape index: {}]
  %s5 = inlined_call_operand.vmem [shape: bf16[32,32], index: 5, kind: input, shape index: {}]
  %s6 = inlined_call_operand.hbm [shape: bf16[32,32], index: 6, kind: input, shape index: {}]
  %s7 = inlined_call_operand.hbm [shape: bf16[32,32], index: 7, kind: input, shape index: {}]
  %s8 = inlined_call_operand.vmem [shape: f32[1,32], index: 8, kind: input, shape index: {}]
  %s9 = inlined_call_operand.hbm [shape: f32[2,256], index: 9, kind: output, shape index: {}]
  %s10 = sld [smem:[#allocation0]]
  $region70: #{tpu_custom_call.1} parent=0
    _
  %s12 = ssub.s32 1, %s10
  %s13 = scalar_select 0, %s12, %s10
  $region1: #{tpu_custom_call.1} parent=0
    #allocation2 [shape = 'u8[8192]{0}', space=vmem, size = 0x2000, scoped, tag = 'input window, operand 0, single buffered']
    #allocation3 [shape = 's32[1]{0}', space=sflag, size = 0x4, scoped, tag = 'scoped memory for tpu_custom_call.1']
    #allocation4 [shape = 's32[1]{0}', space=sflag, size = 0x4, scoped, tag = 'scoped memory for tpu_custom_call.1']
    #allocation5 [shape = 'u8[65536]{0}', space=vmem, size = 0x10000, scoped, tag = 'input window, operand 2, single buffered']
    #allocation6 [shape = 's32[1]{0}', space=sflag, size = 0x4, scoped, tag = 'scoped memory for tpu_custom_call.1']
    #allocation7 [shape = 'u8[65536]{0}', space=vmem, size = 0x10000, scoped, tag = 'input window, operand 3, single buffered']
    #allocation8 [shape = 'u8[2048]{0}', space=vmem, size = 0x800, scoped, tag = 'input window, operand 4, single buffered']
    #allocation9 [shape = 's32[1]{0}', space=sflag, size = 0x4, scoped, tag = 'scoped memory for tpu_custom_call.1']
    #allocation10 [shape = 'u8[8192]{0}', space=vmem, size = 0x2000, scoped, tag = 'input window, operand 6, single buffered']
    #allocation11 [shape = 'u8[8192]{0}', space=vmem, size = 0x2000, scoped, tag = 'input window, operand 7, single buffered']
    #allocation12 [shape = 's32[1]{0}', space=sflag, size = 0x4, scoped, tag = 'scoped memory for tpu_custom_call.1']
    #allocation13 [shape = 'u8[2048]{0}', space=vmem, size = 0x800, scoped, tag = 'output window, operand 0, single buffered']
    %14 = vsyncpa [#allocation3], 0
    %15 = vsyncpa [#allocation6], 0
    %16 = vsyncpa [#allocation9], 0
    %17 = vsyncpa [#allocation12], 0
    %18 = vsyncpa [#allocation4], 0
    // Predicated region
    $region2: #{tpu_custom_call.1} parent=1 // pred_check
      _
    $region3: #{tpu_custom_call.1} parent=1 // pred_check_branch
      %20 = sbr.rel (0) target = $region5
    $region4: #{tpu_custom_call.1} parent=1 // pred_region
      %s22 = ssub.s32 256, 256
      %23 = vsyncadd [#allocation3], %s22
      %s24 = sshll.u32 [#allocation2], 4
      %s25 = int_to_ptr.vmem [resolvable:$true] %s24
      %30 = dma.hbm_to_vmem [thread:$0]  %s0, 256, %s25, [#allocation3], 128, 128, 8
    $region5: #{tpu_custom_call.1} parent=1 // pred_fallthru
      _
    // Predicated region
    $region6: #{tpu_custom_call.1} parent=1 // pred_check
      _
    $region7: #{tpu_custom_call.1} parent=1 // pred_check_branch
      %32 = sbr.rel (0) target = $region9
    $region8: #{tpu_custom_call.1} parent=1 // pred_region
      _
    $region9: #{tpu_custom_call.1} parent=1 // pred_fallthru
      _
    // Predicated region
    $region10: #{tpu_custom_call.1} parent=1 // pred_check
      _
    $region11: #{tpu_custom_call.1} parent=1 // pred_check_branch
      %34 = sbr.rel (0) target = $region13
    $region12: #{tpu_custom_call.1} parent=1 // pred_region
      %s36 = ssub.s32 2048, 2048
      %37 = vsyncadd [#allocation6], %s36
      %s38 = sshll.u32 [#allocation5], 4
      %s39 = int_to_ptr.vmem [resolvable:$true] %s38
      %44 = dma.hbm_to_vmem [thread:$0]  %s2, 2048, %s39, [#allocation6], 128, 128, 8
    $region13: #{tpu_custom_call.1} parent=1 // pred_fallthru
      _
    // Predicated region
    $region14: #{tpu_custom_call.1} parent=1 // pred_check
      _
    $region15: #{tpu_custom_call.1} parent=1 // pred_check_branch
      %46 = sbr.rel (0) target = $region17
    $region16: #{tpu_custom_call.1} parent=1 // pred_region
      %s48 = ssub.s32 2048, 2048
      %49 = vsyncadd [#allocation6], %s48
      %s50 = sshll.u32 [#allocation7], 4
      %s51 = int_to_ptr.vmem [resolvable:$true] %s50
      %56 = dma.hbm_to_vmem [thread:$0]  %s3, 2048, %s51, [#allocation6], 128, 128, 8
    $region17: #{tpu_custom_call.1} parent=1 // pred_fallthru
      _
    // Predicated region
    $region18: #{tpu_custom_call.1} parent=1 // pred_check
      _
    $region19: #{tpu_custom_call.1} parent=1 // pred_check_branch
      %58 = sbr.rel (0) target = $region21
    $region20: #{tpu_custom_call.1} parent=1 // pred_region
      %s60 = ssub.s32 64, 64
      %61 = vsyncadd [#allocation9], %s60
      %s62 = sshll.u32 [#allocation8], 4
      %s63 = int_to_ptr.vmem [resolvable:$true] %s62
      %68 = dma.hbm_to_vmem [thread:$0]  %s4, 64, %s63, [#allocation9], 16, 16, 1
    $region21: #{tpu_custom_call.1} parent=1 // pred_fallthru
      _
    // Predicated region
    $region22: #{tpu_custom_call.1} parent=1 // pred_check
      _
    $region23: #{tpu_custom_call.1} parent=1 // pred_check_branch
      %70 = sbr.rel (0) target = $region25
    $region24: #{tpu_custom_call.1} parent=1 // pred_region
      _
    $region25: #{tpu_custom_call.1} parent=1 // pred_fallthru
      _
    // Predicated region
    $region26: #{tpu_custom_call.1} parent=1 // pred_check
      _
    $region27: #{tpu_custom_call.1} parent=1 // pred_check_branch
      %72 = sbr.rel (0) target = $region29
    $region28: #{tpu_custom_call.1} parent=1 // pred_region
      %s74 = ssub.s32 256, 256
      %75 = vsyncadd [#allocation9], %s74
      %s76 = sshll.u32 [#allocation10], 4
      %s77 = int_to_ptr.vmem [resolvable:$true] %s76
      %82 = dma.hbm_to_vmem [thread:$0]  %s6, 256, %s77, [#allocation9], 64, 64, 4
    $region29: #{tpu_custom_call.1} parent=1 // pred_fallthru
      _
    // Predicated region
    $region30: #{tpu_custom_call.1} parent=1 // pred_check
      _
    $region31: #{tpu_custom_call.1} parent=1 // pred_check_branch
      %84 = sbr.rel (0) target = $region33
    $region32: #{tpu_custom_call.1} parent=1 // pred_region
      %s86 = ssub.s32 256, 256
      %87 = vsyncadd [#allocation12], %s86
      %s88 = sshll.u32 [#allocation11], 4
      %s89 = int_to_ptr.vmem [resolvable:$true] %s88
      %94 = dma.hbm_to_vmem [thread:$0]  %s7, 256, %s89, [#allocation12], 64, 64, 4
    $region33: #{tpu_custom_call.1} parent=1 // pred_fallthru
      _
    // Predicated region
    $region34: #{tpu_custom_call.1} parent=1 // pred_check
      _
    $region35: #{tpu_custom_call.1} parent=1 // pred_check_branch
      %96 = sbr.rel (0) target = $region37
    $region36: #{tpu_custom_call.1} parent=1 // pred_region
      _
    $region37: #{tpu_custom_call.1} parent=1 // pred_fallthru
      _
    // Predicated region
    $region38: #{tpu_custom_call.1} parent=1 // pred_check
      _
    $region39: #{tpu_custom_call.1} parent=1 // pred_check_branch
      %98 = sbr.rel (0) target = $region41
    $region40: #{tpu_custom_call.1} parent=1 // pred_region
      %99 = dma.done [#allocation3], 256
    $region41: #{tpu_custom_call.1} parent=1 // pred_fallthru
      _
    // Predicated region
    $region42: #{tpu_custom_call.1} parent=1 // pred_check
      _
    $region43: #{tpu_custom_call.1} parent=1 // pred_check_branch
      %101 = sbr.rel (0) target = $region45
    $region44: #{tpu_custom_call.1} parent=1 // pred_region
      %102 = dma.done [#allocation6], 2048
    $region45: #{tpu_custom_call.1} parent=1 // pred_fallthru
      _
    // Predicated region
    $region46: #{tpu_custom_call.1} parent=1 // pred_check
      _
    $region47: #{tpu_custom_call.1} parent=1 // pred_check_branch
      %104 = sbr.rel (0) target = $region49
    $region48: #{tpu_custom_call.1} parent=1 // pred_region
      %105 = dma.done [#allocation6], 2048
    $region49: #{tpu_custom_call.1} parent=1 // pred_fallthru
      _
    // Predicated region
    $region50: #{tpu_custom_call.1} parent=1 // pred_check
      _
    $region51: #{tpu_custom_call.1} parent=1 // pred_check_branch
      %107 = sbr.rel (0) target = $region53
    $region52: #{tpu_custom_call.1} parent=1 // pred_region
      %108 = dma.done [#allocation9], 64
    $region53: #{tpu_custom_call.1} parent=1 // pred_fallthru
      _
    // Predicated region
    $region54: #{tpu_custom_call.1} parent=1 // pred_check
      _
    $region55: #{tpu_custom_call.1} parent=1 // pred_check_branch
      %110 = sbr.rel (0) target = $region57
    $region56: #{tpu_custom_call.1} parent=1 // pred_region
      %111 = dma.done [#allocation9], 256
    $region57: #{tpu_custom_call.1} parent=1 // pred_fallthru
      _
    // Predicated region
    $region58: #{tpu_custom_call.1} parent=1 // pred_check
      _
    $region59: #{tpu_custom_call.1} parent=1 // pred_check_branch
      %113 = sbr.rel (0) target = $region61
    $region60: #{tpu_custom_call.1} parent=1 // pred_region
      %114 = dma.done [#allocation12], 256
    $region61: #{tpu_custom_call.1} parent=1 // pred_fallthru
      _
    %v116 = vld [vmem:[#allocation5] sm:$0xff]
    %v117 = vld [vmem:[#allocation5 + $0x8] sm:$0xff]
    %v118 = vld [vmem:[#allocation5 + $0x10] sm:$0xff]
    %v119 = vld [vmem:[#allocation5 + $0x18] sm:$0xff]
    %s120 = scalar_lea.vmem [#allocation5], 32
    %v121 = vld [vmem:[%s120] sm:$0xff]
    %v122 = vld [vmem:[%s120 + $0x8] sm:$0xff]
    %v123 = vld [vmem:[%s120 + $0x10] sm:$0xff]
    %v124 = vld [vmem:[%s120 + $0x18] sm:$0xff]
    %s125 = scalar_lea.vmem [#allocation5], 64
    %v126 = vld [vmem:[%s125] sm:$0xff]
    %v127 = vld [vmem:[%s125 + $0x8] sm:$0xff]
    %v128 = vld [vmem:[%s125 + $0x10] sm:$0xff]
    %v129 = vld [vmem:[%s125 + $0x18] sm:$0xff]
    %s130 = scalar_lea.vmem [#allocation5], 96
    %v131 = vld [vmem:[%s130] sm:$0xff]
    %v132 = vld [vmem:[%s130 + $0x8] sm:$0xff]
    %v133 = vld [vmem:[%s130 + $0x10] sm:$0xff]
    %v134 = vld [vmem:[%s130 + $0x18] sm:$0xff]
    %v135 = vld [vmem:[#allocation7] sm:$0xff]
    %v136 = vld [vmem:[#allocation7 + $0x8] sm:$0xff]
    %v137 = vld [vmem:[#allocation7 + $0x10] sm:$0xff]
    %v138 = vld [vmem:[#allocation7 + $0x18] sm:$0xff]
    %s139 = scalar_lea.vmem [#allocation7], 32
    %v140 = vld [vmem:[%s139] sm:$0xff]
    %v141 = vld [vmem:[%s139 + $0x8] sm:$0xff]
    %v142 = vld [vmem:[%s139 + $0x10] sm:$0xff]
    %v143 = vld [vmem:[%s139 + $0x18] sm:$0xff]
    %s144 = scalar_lea.vmem [#allocation7], 64
    %v145 = vld [vmem:[%s144] sm:$0xff]
    %v146 = vld [vmem:[%s144 + $0x8] sm:$0xff]
    %v147 = vld [vmem:[%s144 + $0x10] sm:$0xff]
    %v148 = vld [vmem:[%s144 + $0x18] sm:$0xff]
    %s149 = scalar_lea.vmem [#allocation7], 96
    %v150 = vld [vmem:[%s149] sm:$0xff]
    %v151 = vld [vmem:[%s149 + $0x8] sm:$0xff]
    %v152 = vld [vmem:[%s149 + $0x10] sm:$0xff]
    %v153 = vld [vmem:[%s149 + $0x18] sm:$0xff]
    %v154 = vld [vmem:[#allocation8] sm:$0x1]
    %v156 = vlaneseq
    %v157 = vshrl.u32 %v156, 7
    %v158 = vsub.s32 0, %v157
    %v159 = vrot.slane %v154, %v158
    %s161 = scalar_lea.vmem [#allocation8], 1
    %v162 = vld [vmem:[%s161] sm:$0x1]
    %v164 = vlaneseq
    %v165 = vshrl.u32 %v164, 7
    %v166 = vsub.s32 0, %v165
    %v167 = vrot.slane %v162, %v166
    %s169 = scalar_lea.vmem [#allocation8], 2
    %v170 = vld [vmem:[%s169] sm:$0x1]
    %v172 = vlaneseq
    %v173 = vshrl.u32 %v172, 7
    %v174 = vsub.s32 0, %v173
    %v175 = vrot.slane %v170, %v174
    %s177 = scalar_lea.vmem [#allocation8], 3
    %v178 = vld [vmem:[%s177] sm:$0x1]
    %v180 = vlaneseq
    %v181 = vshrl.u32 %v180, 7
    %v182 = vsub.s32 0, %v181
    %v183 = vrot.slane %v178, %v182
    %v185 = vld [vmem:[%s1] sm:$0x3]
    %v186 = vlaneseq
    %v187 = vshrl.u32 %v186, 7
    %v188 = vsub.s32 0, %v187
    %v189 = vrot.slane %v185, %v188
    %v190 = vlaneseq
    %v191 = vshrl.u32 %v190, 7
    %v192 = vsub.s32 1, %v191
    %v193 = vrot.slane %v185, %v192
    %v194 = vld [vmem:[#allocation2] sm:$0xff]
    %v195 = vld [vmem:[#allocation2 + $0x8] sm:$0xff]
    %v196 = vmul.f32 %v194, %v189
    %v197 = vmul.f32 %v195, %v189
    %vm198 = vcmask 261120
    %v199 = vsel %vm198, %v196, 0.0
    %200 = vadd.xlane.f32.xlu0 %v199
    %v201 = vpop.xlane.xlu0 %200
    %v202 = vsel %vm198, %v197, 0.0
    %203 = vadd.xlane.f32.xlu0 %v202
    %v204 = vpop.xlane.xlu0 %203
    %v205 = vrot.slane %v201, 4
    %v206 = vmax.f32 %v201, %v205
    %v207 = vrot.slane %v206, 2
    %v208 = vmax.f32 %v206, %v207
    %v209 = vrot.slane %v208, 1
    %v210 = vmax.f32 %v208, %v209
    %v211 = vrot.slane %v204, 4
    %v212 = vmax.f32 %v204, %v211
    %v213 = vrot.slane %v212, 2
    %v214 = vmax.f32 %v212, %v213
    %v215 = vrot.slane %v214, 1
    %v216 = vmax.f32 %v214, %v215
    %v217 = vsub.f32 %v201, %v210
    %v218 = vsub.f32 %v204, %v216
    %v219 = vmul.f32 %v217, 1.442695
    %v220 = vpow.pop %v219
    %v221 = vmul.f32 %v218, 1.442695
    %v222 = vpow.pop %v221
    %v223 = vrot.slane %v220, 4
    %v224 = vadd.f32 %v220, %v223
    %v225 = vrot.slane %v224, 2
    %v226 = vadd.f32 %v224, %v225
    %v227 = vrot.slane %v226, 1
    %v228 = vadd.f32 %v226, %v227
    %v229 = vrot.slane %v222, 4
    %v230 = vadd.f32 %v222, %v229
    %v231 = vrot.slane %v230, 2
    %v232 = vadd.f32 %v230, %v231
    %v233 = vrot.slane %v232, 1
    %v234 = vadd.f32 %v232, %v233
    %v235 = vmul.f32 %v220, %v194
    %v236 = vmul.f32 %v222, %v195
    %v237 = vsel %vm198, %v235, 0.0
    %v238 = vrot.slane %v237, 4
    %v239 = vadd.f32 %v237, %v238
    %v240 = vrot.slane %v239, 2
    %v241 = vadd.f32 %v239, %v240
    %v242 = vrot.slane %v241, 1
    %v243 = vadd.f32 %v241, %v242
    %v244 = vsel %vm198, %v236, 0.0
    %v245 = vrot.slane %v244, 4
    %v246 = vadd.f32 %v244, %v245
    %v247 = vrot.slane %v246, 2
    %v248 = vadd.f32 %v246, %v247
    %v249 = vrot.slane %v248, 1
    %v250 = vadd.f32 %v248, %v249
    %v251 = vrcp.pop %v228
    %v252 = vrcp.pop %v234
    %v253 = vmul.f32 %v243, %v251
    %v254 = vmul.f32 %v250, %v252
    %vm257 = vcmask 1041409
    %v258 = vsel %vm257, %v254, %v253
    %v259 = vsel %vm198, %v258, 0
    %261 = vmatprep.subr.mxu0 0.0
    %262 = vmatpush1.msra.mxu0 %v135
    %263 = vmatprep.subr.mxu0 0.0
    %264 = vmatpush1.msra.mxu0 %v136
    %265 = vmatprep.subr.mxu0 0.0
    %266 = vmatpush1.msra.mxu0 %v137
    %267 = vmatprep.subr.mxu0 0.0
    %268 = vmatpush1.msra.mxu0 %v138
    %269 = vmatprep.subr.mxu0 0.0
    %270 = vmatpush1.msra.mxu0 0.0
    %271 = vmatprep.subr.mxu0 0.0
    %272 = vmatpush1.msra.mxu0 0.0
    %273 = vmatprep.subr.mxu0 0.0
    %274 = vmatpush1.msra.mxu0 0.0
    %275 = vmatprep.subr.mxu0 0.0
    %276 = vmatpush1.msra.mxu0 0.0
    %277 = vmatprep.subr.mxu0 0.0
    %278 = vmatpush1.msra.mxu0 0.0
    %279 = vmatprep.subr.mxu0 0.0
    %280 = vmatpush1.msra.mxu0 0.0
    %281 = vmatprep.subr.mxu0 0.0
    %282 = vmatpush1.msra.mxu0 0.0
    %283 = vmatprep.subr.mxu0 0.0
    %284 = vmatpush1.msra.mxu0 0.0
    %285 = vmatprep.subr.mxu0 0.0
    %286 = vmatpush1.msra.mxu0 0.0
    %287 = vmatprep.subr.mxu0 0.0
    %288 = vmatpush1.msra.mxu0 0.0
    %289 = vmatprep.subr.mxu0 0.0
    %290 = vmatpush1.msra.mxu0 0.0
    %291 = vmatprep.subr.mxu0 0.0
    %292 = vmatpush1.msra.mxu0 0.0
    %293 = vmatprep.subr.mxu0 0.0
    %294 = vmatpush1.msra.mxu0 0.0
    %295 = vmatprep.subr.mxu0 0.0
    %296 = vmatpush1.msra.mxu0 0.0
    %297 = vmatprep.subr.mxu0 0.0
    %298 = vmatpush1.msra.mxu0 0.0
    %299 = vmatprep.subr.mxu0 0.0
    %300 = vmatpush1.msra.mxu0 0.0
    %301 = vmatprep.subr.mxu0 0.0
    %302 = vmatpush1.msra.mxu0 0.0
    %303 = vmatprep.subr.mxu0 0.0
    %304 = vmatpush1.msra.mxu0 0.0
    %305 = vmatprep.subr.mxu0 0.0
    %306 = vmatpush1.msra.mxu0 0.0
    %307 = vmatprep.subr.mxu0 0.0
    %308 = vmatpush1.msra.mxu0 0.0
    %309 = vmatprep.subr.mxu0 0.0
    %310 = vmatpush1.msra.mxu0 0.0
    %311 = vmatprep.subr.mxu0 0.0
    %312 = vmatpush1.msra.mxu0 0.0
    %313 = vmatprep.subr.mxu0 0.0
    %314 = vmatpush1.msra.mxu0 0.0
    %315 = vmatprep.subr.mxu0 0.0
    %316 = vmatpush1.msra.mxu0 0.0
    %317 = vmatprep.subr.mxu0 0.0
    %318 = vmatpush1.msra.mxu0 0.0
    %319 = vmatprep.subr.mxu0 0.0
    %320 = vmatpush1.msra.mxu0 0.0
    %321 = vmatprep.subr.mxu0 0.0
    %322 = vmatpush1.msra.mxu0 0.0
    %323 = vmatprep.subr.mxu0 0.0
    %324 = vmatpush1.msra.mxu0 0.0
    %325 = vmatprep.mubr.f32.mxu0 0.0
    %326 = vmatmul.mubr.f32.gmra.mrb[0].mxu0 %v259
    %v327 = vpop.f32.mrb[0].mxu0
    %v328 = vadd.f32 0.0, %v327
    %v329 = vpop.f32.mrb[0].mxu0
    %330 = vdwg.mxu0
    %v332 = vsel %vm198, %v189, 0
    %334 = vmatprep.subr.mxu0 0.0
    %335 = vmatpush1.msra.mxu0 %v116
    %336 = vmatprep.subr.mxu0 0.0
    %337 = vmatpush1.msra.mxu0 %v117
    %338 = vmatprep.subr.mxu0 0.0
    %339 = vmatpush1.msra.mxu0 %v118
    %340 = vmatprep.subr.mxu0 0.0
    %341 = vmatpush1.msra.mxu0 %v119
    %342 = vmatprep.subr.mxu0 0.0
    %343 = vmatpush1.msra.mxu0 0.0
    %344 = vmatprep.subr.mxu0 0.0
    %345 = vmatpush1.msra.mxu0 0.0
    %346 = vmatprep.subr.mxu0 0.0
    %347 = vmatpush1.msra.mxu0 0.0
    %348 = vmatprep.subr.mxu0 0.0
    %349 = vmatpush1.msra.mxu0 0.0
    %350 = vmatprep.subr.mxu0 0.0
    %351 = vmatpush1.msra.mxu0 0.0
    %352 = vmatprep.subr.mxu0 0.0
    %353 = vmatpush1.msra.mxu0 0.0
    %354 = vmatprep.subr.mxu0 0.0
    %355 = vmatpush1.msra.mxu0 0.0
    %356 = vmatprep.subr.mxu0 0.0
    %357 = vmatpush1.msra.mxu0 0.0
    %358 = vmatprep.subr.mxu0 0.0
    %359 = vmatpush1.msra.mxu0 0.0
    %360 = vmatprep.subr.mxu0 0.0
    %361 = vmatpush1.msra.mxu0 0.0
    %362 = vmatprep.subr.mxu0 0.0
    %363 = vmatpush1.msra.mxu0 0.0
    %364 = vmatprep.subr.mxu0 0.0
    %365 = vmatpush1.msra.mxu0 0.0
    %366 = vmatprep.subr.mxu0 0.0
    %367 = vmatpush1.msra.mxu0 0.0
    %368 = vmatprep.subr.mxu0 0.0
    %369 = vmatpush1.msra.mxu0 0.0
    %370 = vmatprep.subr.mxu0 0.0
    %371 = vmatpush1.msra.mxu0 0.0
    %372 = vmatprep.subr.mxu0 0.0
    %373 = vmatpush1.msra.mxu0 0.0
    %374 = vmatprep.subr.mxu0 0.0
    %375 = vmatpush1.msra.mxu0 0.0
    %376 = vmatprep.subr.mxu0 0.0
    %377 = vmatpush1.msra.mxu0 0.0
    %378 = vmatprep.subr.mxu0 0.0
    %379 = vmatpush1.msra.mxu0 0.0
    %380 = vmatprep.subr.mxu0 0.0
    %381 = vmatpush1.msra.mxu0 0.0
    %382 = vmatprep.subr.mxu0 0.0
    %383 = vmatpush1.msra.mxu0 0.0
    %384 = vmatprep.subr.mxu0 0.0
    %385 = vmatpush1.msra.mxu0 0.0
    %386 = vmatprep.subr.mxu0 0.0
    %387 = vmatpush1.msra.mxu0 0.0
    %388 = vmatprep.subr.mxu0 0.0
    %389 = vmatpush1.msra.mxu0 0.0
    %390 = vmatprep.subr.mxu0 0.0
    %391 = vmatpush1.msra.mxu0 0.0
    %392 = vmatprep.subr.mxu0 0.0
    %393 = vmatpush1.msra.mxu0 0.0
    %394 = vmatprep.subr.mxu0 0.0
    %395 = vmatpush1.msra.mxu0 0.0
    %396 = vmatprep.subr.mxu0 0.0
    %397 = vmatpush1.msra.mxu0 0.0
    %398 = vmatprep.mubr.f32.mxu0 0.0
    %399 = vmatmul.mubr.f32.gmra.mrb[0].mxu0 %v332
    %v400 = vpop.f32.mrb[0].mxu0
    %v401 = vadd.f32 %v328, %v400
    %v402 = vpop.f32.mrb[0].mxu0
    %403 = vdwg.mxu0
    %v404 = vadd.f32 %v401, %v159
    %v405 = vxor.u32 %v404, 2147483648
    %v406 = vmul.f32 %v405, 1.442695
    %v407 = vpow.pop %v406
    %v408 = vadd.f32 %v407, 1.0
    %v409 = vrcp.pop %v408
    %v410 = vmul.f32 1.0, %v409
    %411 = vmatprep.subr.mxu0 0.0
    %412 = vmatpush1.msra.mxu0 %v140
    %413 = vmatprep.subr.mxu0 0.0
    %414 = vmatpush1.msra.mxu0 %v141
    %415 = vmatprep.subr.mxu0 0.0
    %416 = vmatpush1.msra.mxu0 %v142
    %417 = vmatprep.subr.mxu0 0.0
    %418 = vmatpush1.msra.mxu0 %v143
    %419 = vmatprep.subr.mxu0 0.0
    %420 = vmatpush1.msra.mxu0 0.0
    %421 = vmatprep.subr.mxu0 0.0
    %422 = vmatpush1.msra.mxu0 0.0
    %423 = vmatprep.subr.mxu0 0.0
    %424 = vmatpush1.msra.mxu0 0.0
    %425 = vmatprep.subr.mxu0 0.0
    %426 = vmatpush1.msra.mxu0 0.0
    %427 = vmatprep.subr.mxu0 0.0
    %428 = vmatpush1.msra.mxu0 0.0
    %429 = vmatprep.subr.mxu0 0.0
    %430 = vmatpush1.msra.mxu0 0.0
    %431 = vmatprep.subr.mxu0 0.0
    %432 = vmatpush1.msra.mxu0 0.0
    %433 = vmatprep.subr.mxu0 0.0
    %434 = vmatpush1.msra.mxu0 0.0
    %435 = vmatprep.subr.mxu0 0.0
    %436 = vmatpush1.msra.mxu0 0.0
    %437 = vmatprep.subr.mxu0 0.0
    %438 = vmatpush1.msra.mxu0 0.0
    %439 = vmatprep.subr.mxu0 0.0
    %440 = vmatpush1.msra.mxu0 0.0
    %441 = vmatprep.subr.mxu0 0.0
    %442 = vmatpush1.msra.mxu0 0.0
    %443 = vmatprep.subr.mxu0 0.0
    %444 = vmatpush1.msra.mxu0 0.0
    %445 = vmatprep.subr.mxu0 0.0
    %446 = vmatpush1.msra.mxu0 0.0
    %447 = vmatprep.subr.mxu0 0.0
    %448 = vmatpush1.msra.mxu0 0.0
    %449 = vmatprep.subr.mxu0 0.0
    %450 = vmatpush1.msra.mxu0 0.0
    %451 = vmatprep.subr.mxu0 0.0
    %452 = vmatpush1.msra.mxu0 0.0
    %453 = vmatprep.subr.mxu0 0.0
    %454 = vmatpush1.msra.mxu0 0.0
    %455 = vmatprep.subr.mxu0 0.0
    %456 = vmatpush1.msra.mxu0 0.0
    %457 = vmatprep.subr.mxu0 0.0
    %458 = vmatpush1.msra.mxu0 0.0
    %459 = vmatprep.subr.mxu0 0.0
    %460 = vmatpush1.msra.mxu0 0.0
    %461 = vmatprep.subr.mxu0 0.0
    %462 = vmatpush1.msra.mxu0 0.0
    %463 = vmatprep.subr.mxu0 0.0
    %464 = vmatpush1.msra.mxu0 0.0
    %465 = vmatprep.subr.mxu0 0.0
    %466 = vmatpush1.msra.mxu0 0.0
    %467 = vmatprep.subr.mxu0 0.0
    %468 = vmatpush1.msra.mxu0 0.0
    %469 = vmatprep.subr.mxu0 0.0
    %470 = vmatpush1.msra.mxu0 0.0
    %471 = vmatprep.subr.mxu0 0.0
    %472 = vmatpush1.msra.mxu0 0.0
    %473 = vmatprep.subr.mxu0 0.0
    %474 = vmatpush1.msra.mxu0 0.0
    %475 = vmatprep.mubr.f32.mxu0 0.0
    %476 = vmatmul.mubr.f32.gmra.mrb[0].mxu0 %v259
    %v477 = vpop.f32.mrb[0].mxu0
    %v478 = vadd.f32 0.0, %v477
    %v479 = vpop.f32.mrb[0].mxu0
    %480 = vdwg.mxu0
    %481 = vmatprep.subr.mxu0 0.0
    %482 = vmatpush1.msra.mxu0 %v121
    %483 = vmatprep.subr.mxu0 0.0
    %484 = vmatpush1.msra.mxu0 %v122
    %485 = vmatprep.subr.mxu0 0.0
    %486 = vmatpush1.msra.mxu0 %v123
    %487 = vmatprep.subr.mxu0 0.0
    %488 = vmatpush1.msra.mxu0 %v124
    %489 = vmatprep.subr.mxu0 0.0
    %490 = vmatpush1.msra.mxu0 0.0
    %491 = vmatprep.subr.mxu0 0.0
    %492 = vmatpush1.msra.mxu0 0.0
    %493 = vmatprep.subr.mxu0 0.0
    %494 = vmatpush1.msra.mxu0 0.0
    %495 = vmatprep.subr.mxu0 0.0
    %496 = vmatpush1.msra.mxu0 0.0
    %497 = vmatprep.subr.mxu0 0.0
    %498 = vmatpush1.msra.mxu0 0.0
    %499 = vmatprep.subr.mxu0 0.0
    %500 = vmatpush1.msra.mxu0 0.0
    %501 = vmatprep.subr.mxu0 0.0
    %502 = vmatpush1.msra.mxu0 0.0
    %503 = vmatprep.subr.mxu0 0.0
    %504 = vmatpush1.msra.mxu0 0.0
    %505 = vmatprep.subr.mxu0 0.0
    %506 = vmatpush1.msra.mxu0 0.0
    %507 = vmatprep.subr.mxu0 0.0
    %508 = vmatpush1.msra.mxu0 0.0
    %509 = vmatprep.subr.mxu0 0.0
    %510 = vmatpush1.msra.mxu0 0.0
    %511 = vmatprep.subr.mxu0 0.0
    %512 = vmatpush1.msra.mxu0 0.0
    %513 = vmatprep.subr.mxu0 0.0
    %514 = vmatpush1.msra.mxu0 0.0
    %515 = vmatprep.subr.mxu0 0.0
    %516 = vmatpush1.msra.mxu0 0.0
    %517 = vmatprep.subr.mxu0 0.0
    %518 = vmatpush1.msra.mxu0 0.0
    %519 = vmatprep.subr.mxu0 0.0
    %520 = vmatpush1.msra.mxu0 0.0
    %521 = vmatprep.subr.mxu0 0.0
    %522 = vmatpush1.msra.mxu0 0.0
    %523 = vmatprep.subr.mxu0 0.0
    %524 = vmatpush1.msra.mxu0 0.0
    %525 = vmatprep.subr.mxu0 0.0
    %526 = vmatpush1.msra.mxu0 0.0
    %527 = vmatprep.subr.mxu0 0.0
    %528 = vmatpush1.msra.mxu0 0.0
    %529 = vmatprep.subr.mxu0 0.0
    %530 = vmatpush1.msra.mxu0 0.0
    %531 = vmatprep.subr.mxu0 0.0
    %532 = vmatpush1.msra.mxu0 0.0
    %533 = vmatprep.subr.mxu0 0.0
    %534 = vmatpush1.msra.mxu0 0.0
    %535 = vmatprep.subr.mxu0 0.0
    %536 = vmatpush1.msra.mxu0 0.0
    %537 = vmatprep.subr.mxu0 0.0
    %538 = vmatpush1.msra.mxu0 0.0
    %539 = vmatprep.subr.mxu0 0.0
    %540 = vmatpush1.msra.mxu0 0.0
    %541 = vmatprep.subr.mxu0 0.0
    %542 = vmatpush1.msra.mxu0 0.0
    %543 = vmatprep.subr.mxu0 0.0
    %544 = vmatpush1.msra.mxu0 0.0
    %545 = vmatprep.mubr.f32.mxu0 0.0
    %546 = vmatmul.mubr.f32.gmra.mrb[0].mxu0 %v332
    %v547 = vpop.f32.mrb[0].mxu0
    %v548 = vadd.f32 %v478, %v547
    %v549 = vpop.f32.mrb[0].mxu0
    %550 = vdwg.mxu0
    %v551 = vadd.f32 %v548, %v167
    %v552 = vxor.u32 %v551, 2147483648
    %v553 = vmul.f32 %v552, 1.442695
    %v554 = vpow.pop %v553
    %v555 = vadd.f32 %v554, 1.0
    %v556 = vrcp.pop %v555
    %v557 = vmul.f32 1.0, %v556
    %558 = vmatprep.subr.mxu0 0.0
    %559 = vmatpush1.msra.mxu0 %v145
    %560 = vmatprep.subr.mxu0 0.0
    %561 = vmatpush1.msra.mxu0 %v146
    %562 = vmatprep.subr.mxu0 0.0
    %563 = vmatpush1.msra.mxu0 %v147
    %564 = vmatprep.subr.mxu0 0.0
    %565 = vmatpush1.msra.mxu0 %v148
    %566 = vmatprep.subr.mxu0 0.0
    %567 = vmatpush1.msra.mxu0 0.0
    %568 = vmatprep.subr.mxu0 0.0
    %569 = vmatpush1.msra.mxu0 0.0
    %570 = vmatprep.subr.mxu0 0.0
    %571 = vmatpush1.msra.mxu0 0.0
    %572 = vmatprep.subr.mxu0 0.0
    %573 = vmatpush1.msra.mxu0 0.0
    %574 = vmatprep.subr.mxu0 0.0
    %575 = vmatpush1.msra.mxu0 0.0
    %576 = vmatprep.subr.mxu0 0.0
    %577 = vmatpush1.msra.mxu0 0.0
    %578 = vmatprep.subr.mxu0 0.0
    %579 = vmatpush1.msra.mxu0 0.0
    %580 = vmatprep.subr.mxu0 0.0
    %581 = vmatpush1.msra.mxu0 0.0
    %582 = vmatprep.subr.mxu0 0.0
    %583 = vmatpush1.msra.mxu0 0.0
    %584 = vmatprep.subr.mxu0 0.0
    %585 = vmatpush1.msra.mxu0 0.0
    %586 = vmatprep.subr.mxu0 0.0
    %587 = vmatpush1.msra.mxu0 0.0
    %588 = vmatprep.subr.mxu0 0.0
    %589 = vmatpush1.msra.mxu0 0.0
    %590 = vmatprep.subr.mxu0 0.0
    %591 = vmatpush1.msra.mxu0 0.0
    %592 = vmatprep.subr.mxu0 0.0
    %593 = vmatpush1.msra.mxu0 0.0
    %594 = vmatprep.subr.mxu0 0.0
    %595 = vmatpush1.msra.mxu0 0.0
    %596 = vmatprep.subr.mxu0 0.0
    %597 = vmatpush1.msra.mxu0 0.0
    %598 = vmatprep.subr.mxu0 0.0
    %599 = vmatpush1.msra.mxu0 0.0
    %600 = vmatprep.subr.mxu0 0.0
    %601 = vmatpush1.msra.mxu0 0.0
    %602 = vmatprep.subr.mxu0 0.0
    %603 = vmatpush1.msra.mxu0 0.0
    %604 = vmatprep.subr.mxu0 0.0
    %605 = vmatpush1.msra.mxu0 0.0
    %606 = vmatprep.subr.mxu0 0.0
    %607 = vmatpush1.msra.mxu0 0.0
    %608 = vmatprep.subr.mxu0 0.0
    %609 = vmatpush1.msra.mxu0 0.0
    %610 = vmatprep.subr.mxu0 0.0
    %611 = vmatpush1.msra.mxu0 0.0
    %612 = vmatprep.subr.mxu0 0.0
    %613 = vmatpush1.msra.mxu0 0.0
    %614 = vmatprep.subr.mxu0 0.0
    %615 = vmatpush1.msra.mxu0 0.0
    %616 = vmatprep.subr.mxu0 0.0
    %617 = vmatpush1.msra.mxu0 0.0
    %618 = vmatprep.subr.mxu0 0.0
    %619 = vmatpush1.msra.mxu0 0.0
    %620 = vmatprep.subr.mxu0 0.0
    %621 = vmatpush1.msra.mxu0 0.0
    %622 = vmatprep.mubr.f32.mxu0 0.0
    %623 = vmatmul.mubr.f32.gmra.mrb[0].mxu0 %v259
    %v624 = vpop.f32.mrb[0].mxu0
    %v625 = vadd.f32 0.0, %v624
    %v626 = vpop.f32.mrb[0].mxu0
    %627 = vdwg.mxu0
    %628 = vmatprep.subr.mxu0 0.0
    %629 = vmatpush1.msra.mxu0 %v126
    %630 = vmatprep.subr.mxu0 0.0
    %631 = vmatpush1.msra.mxu0 %v127
    %632 = vmatprep.subr.mxu0 0.0
    %633 = vmatpush1.msra.mxu0 %v128
    %634 = vmatprep.subr.mxu0 0.0
    %635 = vmatpush1.msra.mxu0 %v129
    %636 = vmatprep.subr.mxu0 0.0
    %637 = vmatpush1.msra.mxu0 0.0
    %638 = vmatprep.subr.mxu0 0.0
    %639 = vmatpush1.msra.mxu0 0.0
    %640 = vmatprep.subr.mxu0 0.0
    %641 = vmatpush1.msra.mxu0 0.0
    %642 = vmatprep.subr.mxu0 0.0
    %643 = vmatpush1.msra.mxu0 0.0
    %644 = vmatprep.subr.mxu0 0.0
    %645 = vmatpush1.msra.mxu0 0.0
    %646 = vmatprep.subr.mxu0 0.0
    %647 = vmatpush1.msra.mxu0 0.0
    %648 = vmatprep.subr.mxu0 0.0
    %649 = vmatpush1.msra.mxu0 0.0
    %650 = vmatprep.subr.mxu0 0.0
    %651 = vmatpush1.msra.mxu0 0.0
    %652 = vmatprep.subr.mxu0 0.0
    %653 = vmatpush1.msra.mxu0 0.0
    %654 = vmatprep.subr.mxu0 0.0
    %655 = vmatpush1.msra.mxu0 0.0
    %656 = vmatprep.subr.mxu0 0.0
    %657 = vmatpush1.msra.mxu0 0.0
    %658 = vmatprep.subr.mxu0 0.0
    %659 = vmatpush1.msra.mxu0 0.0
    %660 = vmatprep.subr.mxu0 0.0
    %661 = vmatpush1.msra.mxu0 0.0
    %662 = vmatprep.subr.mxu0 0.0
    %663 = vmatpush1.msra.mxu0 0.0
    %664 = vmatprep.subr.mxu0 0.0
    %665 = vmatpush1.msra.mxu0 0.0
    %666 = vmatprep.subr.mxu0 0.0
    %667 = vmatpush1.msra.mxu0 0.0
    %668 = vmatprep.subr.mxu0 0.0
    %669 = vmatpush1.msra.mxu0 0.0
    %670 = vmatprep.subr.mxu0 0.0
    %671 = vmatpush1.msra.mxu0 0.0
    %672 = vmatprep.subr.mxu0 0.0
    %673 = vmatpush1.msra.mxu0 0.0
    %674 = vmatprep.subr.mxu0 0.0
    %675 = vmatpush1.msra.mxu0 0.0
    %676 = vmatprep.subr.mxu0 0.0
    %677 = vmatpush1.msra.mxu0 0.0
    %678 = vmatprep.subr.mxu0 0.0
    %679 = vmatpush1.msra.mxu0 0.0
    %680 = vmatprep.subr.mxu0 0.0
    %681 = vmatpush1.msra.mxu0 0.0
    %682 = vmatprep.subr.mxu0 0.0
    %683 = vmatpush1.msra.mxu0 0.0
    %684 = vmatprep.subr.mxu0 0.0
    %685 = vmatpush1.msra.mxu0 0.0
    %686 = vmatprep.subr.mxu0 0.0
    %687 = vmatpush1.msra.mxu0 0.0
    %688 = vmatprep.subr.mxu0 0.0
    %689 = vmatpush1.msra.mxu0 0.0
    %690 = vmatprep.subr.mxu0 0.0
    %691 = vmatpush1.msra.mxu0 0.0
    %692 = vmatprep.mubr.f32.mxu0 0.0
    %693 = vmatmul.mubr.f32.gmra.mrb[0].mxu0 %v332
    %v694 = vpop.f32.mrb[0].mxu0
    %v695 = vadd.f32 %v625, %v694
    %v696 = vpop.f32.mrb[0].mxu0
    %697 = vdwg.mxu0
    %v698 = vadd.f32 %v695, %v175
    %v699 = vtanh.pop %v698
    %700 = vmatprep.subr.mxu0 0.0
    %701 = vmatpush1.msra.mxu0 %v150
    %702 = vmatprep.subr.mxu0 0.0
    %703 = vmatpush1.msra.mxu0 %v151
    %704 = vmatprep.subr.mxu0 0.0
    %705 = vmatpush1.msra.mxu0 %v152
    %706 = vmatprep.subr.mxu0 0.0
    %707 = vmatpush1.msra.mxu0 %v153
    %708 = vmatprep.subr.mxu0 0.0
    %709 = vmatpush1.msra.mxu0 0.0
    %710 = vmatprep.subr.mxu0 0.0
    %711 = vmatpush1.msra.mxu0 0.0
    %712 = vmatprep.subr.mxu0 0.0
    %713 = vmatpush1.msra.mxu0 0.0
    %714 = vmatprep.subr.mxu0 0.0
    %715 = vmatpush1.msra.mxu0 0.0
    %716 = vmatprep.subr.mxu0 0.0
    %717 = vmatpush1.msra.mxu0 0.0
    %718 = vmatprep.subr.mxu0 0.0
    %719 = vmatpush1.msra.mxu0 0.0
    %720 = vmatprep.subr.mxu0 0.0
    %721 = vmatpush1.msra.mxu0 0.0
    %722 = vmatprep.subr.mxu0 0.0
    %723 = vmatpush1.msra.mxu0 0.0
    %724 = vmatprep.subr.mxu0 0.0
    %725 = vmatpush1.msra.mxu0 0.0
    %726 = vmatprep.subr.mxu0 0.0
    %727 = vmatpush1.msra.mxu0 0.0
    %728 = vmatprep.subr.mxu0 0.0
    %729 = vmatpush1.msra.mxu0 0.0
    %730 = vmatprep.subr.mxu0 0.0
    %731 = vmatpush1.msra.mxu0 0.0
    %732 = vmatprep.subr.mxu0 0.0
    %733 = vmatpush1.msra.mxu0 0.0
    %734 = vmatprep.subr.mxu0 0.0
    %735 = vmatpush1.msra.mxu0 0.0
    %736 = vmatprep.subr.mxu0 0.0
    %737 = vmatpush1.msra.mxu0 0.0
    %738 = vmatprep.subr.mxu0 0.0
    %739 = vmatpush1.msra.mxu0 0.0
    %740 = vmatprep.subr.mxu0 0.0
    %741 = vmatpush1.msra.mxu0 0.0
    %742 = vmatprep.subr.mxu0 0.0
    %743 = vmatpush1.msra.mxu0 0.0
    %744 = vmatprep.subr.mxu0 0.0
    %745 = vmatpush1.msra.mxu0 0.0
    %746 = vmatprep.subr.mxu0 0.0
    %747 = vmatpush1.msra.mxu0 0.0
    %748 = vmatprep.subr.mxu0 0.0
    %749 = vmatpush1.msra.mxu0 0.0
    %750 = vmatprep.subr.mxu0 0.0
    %751 = vmatpush1.msra.mxu0 0.0
    %752 = vmatprep.subr.mxu0 0.0
    %753 = vmatpush1.msra.mxu0 0.0
    %754 = vmatprep.subr.mxu0 0.0
    %755 = vmatpush1.msra.mxu0 0.0
    %756 = vmatprep.subr.mxu0 0.0
    %757 = vmatpush1.msra.mxu0 0.0
    %758 = vmatprep.subr.mxu0 0.0
    %759 = vmatpush1.msra.mxu0 0.0
    %760 = vmatprep.subr.mxu0 0.0
    %761 = vmatpush1.msra.mxu0 0.0
    %762 = vmatprep.subr.mxu0 0.0
    %763 = vmatpush1.msra.mxu0 0.0
    %764 = vmatprep.mubr.f32.mxu0 0.0
    %765 = vmatmul.mubr.f32.gmra.mrb[0].mxu0 %v259
    %v766 = vpop.f32.mrb[0].mxu0
    %v767 = vadd.f32 0.0, %v766
    %v768 = vpop.f32.mrb[0].mxu0
    %769 = vdwg.mxu0
    %770 = vmatprep.subr.mxu0 0.0
    %771 = vmatpush1.msra.mxu0 %v131
    %772 = vmatprep.subr.mxu0 0.0
    %773 = vmatpush1.msra.mxu0 %v132
    %774 = vmatprep.subr.mxu0 0.0
    %775 = vmatpush1.msra.mxu0 %v133
    %776 = vmatprep.subr.mxu0 0.0
    %777 = vmatpush1.msra.mxu0 %v134
    %778 = vmatprep.subr.mxu0 0.0
    %779 = vmatpush1.msra.mxu0 0.0
    %780 = vmatprep.subr.mxu0 0.0
    %781 = vmatpush1.msra.mxu0 0.0
    %782 = vmatprep.subr.mxu0 0.0
    %783 = vmatpush1.msra.mxu0 0.0
    %784 = vmatprep.subr.mxu0 0.0
    %785 = vmatpush1.msra.mxu0 0.0
    %786 = vmatprep.subr.mxu0 0.0
    %787 = vmatpush1.msra.mxu0 0.0
    %788 = vmatprep.subr.mxu0 0.0
    %789 = vmatpush1.msra.mxu0 0.0
    %790 = vmatprep.subr.mxu0 0.0
    %791 = vmatpush1.msra.mxu0 0.0
    %792 = vmatprep.subr.mxu0 0.0
    %793 = vmatpush1.msra.mxu0 0.0
    %794 = vmatprep.subr.mxu0 0.0
    %795 = vmatpush1.msra.mxu0 0.0
    %796 = vmatprep.subr.mxu0 0.0
    %797 = vmatpush1.msra.mxu0 0.0
    %798 = vmatprep.subr.mxu0 0.0
    %799 = vmatpush1.msra.mxu0 0.0
    %800 = vmatprep.subr.mxu0 0.0
    %801 = vmatpush1.msra.mxu0 0.0
    %802 = vmatprep.subr.mxu0 0.0
    %803 = vmatpush1.msra.mxu0 0.0
    %804 = vmatprep.subr.mxu0 0.0
    %805 = vmatpush1.msra.mxu0 0.0
    %806 = vmatprep.subr.mxu0 0.0
    %807 = vmatpush1.msra.mxu0 0.0
    %808 = vmatprep.subr.mxu0 0.0
    %809 = vmatpush1.msra.mxu0 0.0
    %810 = vmatprep.subr.mxu0 0.0
    %811 = vmatpush1.msra.mxu0 0.0
    %812 = vmatprep.subr.mxu0 0.0
    %813 = vmatpush1.msra.mxu0 0.0
    %814 = vmatprep.subr.mxu0 0.0
    %815 = vmatpush1.msra.mxu0 0.0
    %816 = vmatprep.subr.mxu0 0.0
    %817 = vmatpush1.msra.mxu0 0.0
    %818 = vmatprep.subr.mxu0 0.0
    %819 = vmatpush1.msra.mxu0 0.0
    %820 = vmatprep.subr.mxu0 0.0
    %821 = vmatpush1.msra.mxu0 0.0
    %822 = vmatprep.subr.mxu0 0.0
    %823 = vmatpush1.msra.mxu0 0.0
    %824 = vmatprep.subr.mxu0 0.0
    %825 = vmatpush1.msra.mxu0 0.0
    %826 = vmatprep.subr.mxu0 0.0
    %827 = vmatpush1.msra.mxu0 0.0
    %828 = vmatprep.subr.mxu0 0.0
    %829 = vmatpush1.msra.mxu0 0.0
    %830 = vmatprep.subr.mxu0 0.0
    %831 = vmatpush1.msra.mxu0 0.0
    %832 = vmatprep.subr.mxu0 0.0
    %833 = vmatpush1.msra.mxu0 0.0
    %834 = vmatprep.mubr.f32.mxu0 0.0
    %835 = vmatmul.mubr.f32.gmra.mrb[0].mxu0 %v332
    %v836 = vpop.f32.mrb[0].mxu0
    %v837 = vadd.f32 %v767, %v836
    %v838 = vpop.f32.mrb[0].mxu0
    %839 = vdwg.mxu0
    %v840 = vadd.f32 %v837, %v183
    %v841 = vxor.u32 %v840, 2147483648
    %v842 = vmul.f32 %v841, 1.442695
    %v843 = vpow.pop %v842
    %v844 = vadd.f32 %v843, 1.0
    %v845 = vrcp.pop %v844
    %v846 = vmul.f32 1.0, %v845
    %v847 = vmul.f32 %v557, %v193
    %v848 = vmul.f32 %v410, %v699
    %v849 = vadd.f32 %v847, %v848
    %v850 = vtanh.pop %v849
    %v851 = vmul.f32 %v846, %v850
    %v854 = vunpack.c.l.s4 1966171168
    %v855 = vunpack.c.0.s8 %v854
    %v856 = vlaneseq
    %v857 = vshrl.u32 %v856, 7
    %v858 = vsub.s32 %v855, %v857
    %v859 = vrot.slane %v851, %v858
    %v860 = vcombine.high %v859, %v859
    %v862 = vunpack.c.l.s4 1966171168
    %v863 = vunpack.c.0.s8 %v862
    %v864 = vlaneseq
    %v865 = vshrl.u32 %v864, 7
    %v866 = vsub.s32 %v863, %v865
    %v867 = vrot.slane %v859, %v866
    %v869 = vunpack.c.l.s4 1966171168
    %v870 = vunpack.c.0.s8 %v869
    %v871 = vlaneseq
    %v872 = vshrl.u32 %v871, 7
    %v873 = vsub.s32 %v870, %v872
    %v874 = vrot.slane %v860, %v873
    %v875 = vlaneseq
    %v876 = vshrl.u32 %v875, 7
    %v877 = vsub.s32 0, %v876
    %v878 = vrot.slane %v867, %v877
    %v879 = vlaneseq
    %v880 = vshrl.u32 %v879, 7
    %v881 = vsub.s32 0, %v880
    %v882 = vrot.slane %v874, %v881
    %v885 = vmul.f32 %v194, %v878
    %v886 = vmul.f32 %v195, %v882
    %v887 = vsel %vm198, %v885, 0.0
    %888 = vadd.xlane.f32.xlu0 %v887
    %v889 = vpop.xlane.xlu0 %888
    %v890 = vsel %vm198, %v886, 0.0
    %891 = vadd.xlane.f32.xlu0 %v890
    %v892 = vpop.xlane.xlu0 %891
    %v893 = vrot.slane %v889, 4
    %v894 = vmax.f32 %v889, %v893
    %v895 = vrot.slane %v894, 2
    %v896 = vmax.f32 %v894, %v895
    %v897 = vrot.slane %v896, 1
    %v898 = vmax.f32 %v896, %v897
    %v899 = vrot.slane %v892, 4
    %v900 = vmax.f32 %v892, %v899
    %v901 = vrot.slane %v900, 2
    %v902 = vmax.f32 %v900, %v901
    %v903 = vrot.slane %v902, 1
    %v904 = vmax.f32 %v902, %v903
    %v905 = vsub.f32 %v889, %v898
    %v906 = vsub.f32 %v892, %v904
    %v907 = vmul.f32 %v905, 1.442695
    %v908 = vpow.pop %v907
    %v909 = vmul.f32 %v906, 1.442695
    %v910 = vpow.pop %v909
    %v911 = vrot.slane %v908, 4
    %v912 = vadd.f32 %v908, %v911
    %v913 = vrot.slane %v912, 2
    %v914 = vadd.f32 %v912, %v913
    %v915 = vrot.slane %v914, 1
    %v916 = vadd.f32 %v914, %v915
    %v917 = vrot.slane %v910, 4
    %v918 = vadd.f32 %v910, %v917
    %v919 = vrot.slane %v918, 2
    %v920 = vadd.f32 %v918, %v919
    %v921 = vrot.slane %v920, 1
    %v922 = vadd.f32 %v920, %v921
    %v923 = vmul.f32 %v908, %v194
    %v924 = vmul.f32 %v910, %v195
    %v925 = vsel %vm198, %v923, 0.0
    %v926 = vrot.slane %v925, 4
    %v927 = vadd.f32 %v925, %v926
    %v928 = vrot.slane %v927, 2
    %v929 = vadd.f32 %v927, %v928
    %v930 = vrot.slane %v929, 1
    %v931 = vadd.f32 %v929, %v930
    %v932 = vsel %vm198, %v924, 0.0
    %v933 = vrot.slane %v932, 4
    %v934 = vadd.f32 %v932, %v933
    %v935 = vrot.slane %v934, 2
    %v936 = vadd.f32 %v934, %v935
    %v937 = vrot.slane %v936, 1
    %v938 = vadd.f32 %v936, %v937
    %v939 = vrcp.pop %v916
    %v940 = vrcp.pop %v922
    %v941 = vmul.f32 %v931, %v939
    %v942 = vmul.f32 %v938, %v940
    %v945 = vsel %vm257, %v942, %v941
    %v946 = vsel %vm198, %v945, 0
    %948 = vmatprep.subr.mxu0 0.0
    %949 = vmatpush1.msra.mxu0 %v135
    %950 = vmatprep.subr.mxu0 0.0
    %951 = vmatpush1.msra.mxu0 %v136
    %952 = vmatprep.subr.mxu0 0.0
    %953 = vmatpush1.msra.mxu0 %v137
    %954 = vmatprep.subr.mxu0 0.0
    %955 = vmatpush1.msra.mxu0 %v138
    %956 = vmatprep.subr.mxu0 0.0
    %957 = vmatpush1.msra.mxu0 0.0
    %958 = vmatprep.subr.mxu0 0.0
    %959 = vmatpush1.msra.mxu0 0.0
    %960 = vmatprep.subr.mxu0 0.0
    %961 = vmatpush1.msra.mxu0 0.0
    %962 = vmatprep.subr.mxu0 0.0
    %963 = vmatpush1.msra.mxu0 0.0
    %964 = vmatprep.subr.mxu0 0.0
    %965 = vmatpush1.msra.mxu0 0.0
    %966 = vmatprep.subr.mxu0 0.0
    %967 = vmatpush1.msra.mxu0 0.0
    %968 = vmatprep.subr.mxu0 0.0
    %969 = vmatpush1.msra.mxu0 0.0
    %970 = vmatprep.subr.mxu0 0.0
    %971 = vmatpush1.msra.mxu0 0.0
    %972 = vmatprep.subr.mxu0 0.0
    %973 = vmatpush1.msra.mxu0 0.0
    %974 = vmatprep.subr.mxu0 0.0
    %975 = vmatpush1.msra.mxu0 0.0
    %976 = vmatprep.subr.mxu0 0.0
    %977 = vmatpush1.msra.mxu0 0.0
    %978 = vmatprep.subr.mxu0 0.0
    %979 = vmatpush1.msra.mxu0 0.0
    %980 = vmatprep.subr.mxu0 0.0
    %981 = vmatpush1.msra.mxu0 0.0
    %982 = vmatprep.subr.mxu0 0.0
    %983 = vmatpush1.msra.mxu0 0.0
    %984 = vmatprep.subr.mxu0 0.0
    %985 = vmatpush1.msra.mxu0 0.0
    %986 = vmatprep.subr.mxu0 0.0
    %987 = vmatpush1.msra.mxu0 0.0
    %988 = vmatprep.subr.mxu0 0.0
    %989 = vmatpush1.msra.mxu0 0.0
    %990 = vmatprep.subr.mxu0 0.0
    %991 = vmatpush1.msra.mxu0 0.0
    %992 = vmatprep.subr.mxu0 0.0
    %993 = vmatpush1.msra.mxu0 0.0
    %994 = vmatprep.subr.mxu0 0.0
    %995 = vmatpush1.msra.mxu0 0.0
    %996 = vmatprep.subr.mxu0 0.0
    %997 = vmatpush1.msra.mxu0 0.0
    %998 = vmatprep.subr.mxu0 0.0
    %999 = vmatpush1.msra.mxu0 0.0
    %1000 = vmatprep.subr.mxu0 0.0
    %1001 = vmatpush1.msra.mxu0 0.0
    %1002 = vmatprep.subr.mxu0 0.0
    %1003 = vmatpush1.msra.mxu0 0.0
    %1004 = vmatprep.subr.mxu0 0.0
    %1005 = vmatpush1.msra.mxu0 0.0
    %1006 = vmatprep.subr.mxu0 0.0
    %1007 = vmatpush1.msra.mxu0 0.0
    %1008 = vmatprep.subr.mxu0 0.0
    %1009 = vmatpush1.msra.mxu0 0.0
    %1010 = vmatprep.subr.mxu0 0.0
    %1011 = vmatpush1.msra.mxu0 0.0
    %1012 = vmatprep.mubr.f32.mxu0 0.0
    %1013 = vmatmul.mubr.f32.gmra.mrb[0].mxu0 %v946
    %v1014 = vpop.f32.mrb[0].mxu0
    %v1015 = vadd.f32 0.0, %v1014
    %v1016 = vpop.f32.mrb[0].mxu0
    %1017 = vdwg.mxu0
    %v1018 = vsel %vm198, %v851, 0
    %1020 = vmatprep.subr.mxu0 0.0
    %1021 = vmatpush1.msra.mxu0 %v116
    %1022 = vmatprep.subr.mxu0 0.0
    %1023 = vmatpush1.msra.mxu0 %v117
    %1024 = vmatprep.subr.mxu0 0.0
    %1025 = vmatpush1.msra.mxu0 %v118
    %1026 = vmatprep.subr.mxu0 0.0
    %1027 = vmatpush1.msra.mxu0 %v119
    %1028 = vmatprep.subr.mxu0 0.0
    %1029 = vmatpush1.msra.mxu0 0.0
    %1030 = vmatprep.subr.mxu0 0.0
    %1031 = vmatpush1.msra.mxu0 0.0
    %1032 = vmatprep.subr.mxu0 0.0
    %1033 = vmatpush1.msra.mxu0 0.0
    %1034 = vmatprep.subr.mxu0 0.0
    %1035 = vmatpush1.msra.mxu0 0.0
    %1036 = vmatprep.subr.mxu0 0.0
    %1037 = vmatpush1.msra.mxu0 0.0
    %1038 = vmatprep.subr.mxu0 0.0
    %1039 = vmatpush1.msra.mxu0 0.0
    %1040 = vmatprep.subr.mxu0 0.0
    %1041 = vmatpush1.msra.mxu0 0.0
    %1042 = vmatprep.subr.mxu0 0.0
    %1043 = vmatpush1.msra.mxu0 0.0
    %1044 = vmatprep.subr.mxu0 0.0
    %1045 = vmatpush1.msra.mxu0 0.0
    %1046 = vmatprep.subr.mxu0 0.0
    %1047 = vmatpush1.msra.mxu0 0.0
    %1048 = vmatprep.subr.mxu0 0.0
    %1049 = vmatpush1.msra.mxu0 0.0
    %1050 = vmatprep.subr.mxu0 0.0
    %1051 = vmatpush1.msra.mxu0 0.0
    %1052 = vmatprep.subr.mxu0 0.0
    %1053 = vmatpush1.msra.mxu0 0.0
    %1054 = vmatprep.subr.mxu0 0.0
    %1055 = vmatpush1.msra.mxu0 0.0
    %1056 = vmatprep.subr.mxu0 0.0
    %1057 = vmatpush1.msra.mxu0 0.0
    %1058 = vmatprep.subr.mxu0 0.0
    %1059 = vmatpush1.msra.mxu0 0.0
    %1060 = vmatprep.subr.mxu0 0.0
    %1061 = vmatpush1.msra.mxu0 0.0
    %1062 = vmatprep.subr.mxu0 0.0
    %1063 = vmatpush1.msra.mxu0 0.0
    %1064 = vmatprep.subr.mxu0 0.0
    %1065 = vmatpush1.msra.mxu0 0.0
    %1066 = vmatprep.subr.mxu0 0.0
    %1067 = vmatpush1.msra.mxu0 0.0
    %1068 = vmatprep.subr.mxu0 0.0
    %1069 = vmatpush1.msra.mxu0 0.0
    %1070 = vmatprep.subr.mxu0 0.0
    %1071 = vmatpush1.msra.mxu0 0.0
    %1072 = vmatprep.subr.mxu0 0.0
    %1073 = vmatpush1.msra.mxu0 0.0
    %1074 = vmatprep.subr.mxu0 0.0
    %1075 = vmatpush1.msra.mxu0 0.0
    %1076 = vmatprep.subr.mxu0 0.0
    %1077 = vmatpush1.msra.mxu0 0.0
    %1078 = vmatprep.subr.mxu0 0.0
    %1079 = vmatpush1.msra.mxu0 0.0
    %1080 = vmatprep.subr.mxu0 0.0
    %1081 = vmatpush1.msra.mxu0 0.0
    %1082 = vmatprep.subr.mxu0 0.0
    %1083 = vmatpush1.msra.mxu0 0.0
    %1084 = vmatprep.mubr.f32.mxu0 0.0
    %1085 = vmatmul.mubr.f32.gmra.mrb[0].mxu0 %v1018
    %v1086 = vpop.f32.mrb[0].mxu0
    %v1087 = vadd.f32 %v1015, %v1086
    %v1088 = vpop.f32.mrb[0].mxu0
    %1089 = vdwg.mxu0
    %v1090 = vadd.f32 %v1087, %v159
    %v1091 = vxor.u32 %v1090, 2147483648
    %v1092 = vmul.f32 %v1091, 1.442695
    %v1093 = vpow.pop %v1092
    %v1094 = vadd.f32 %v1093, 1.0
    %v1095 = vrcp.pop %v1094
    %v1096 = vmul.f32 1.0, %v1095
    %1097 = vmatprep.subr.mxu0 0.0
    %1098 = vmatpush1.msra.mxu0 %v140
    %1099 = vmatprep.subr.mxu0 0.0
    %1100 = vmatpush1.msra.mxu0 %v141
    %1101 = vmatprep.subr.mxu0 0.0
    %1102 = vmatpush1.msra.mxu0 %v142
    %1103 = vmatprep.subr.mxu0 0.0
    %1104 = vmatpush1.msra.mxu0 %v143
    %1105 = vmatprep.subr.mxu0 0.0
    %1106 = vmatpush1.msra.mxu0 0.0
    %1107 = vmatprep.subr.mxu0 0.0
    %1108 = vmatpush1.msra.mxu0 0.0
    %1109 = vmatprep.subr.mxu0 0.0
    %1110 = vmatpush1.msra.mxu0 0.0
    %1111 = vmatprep.subr.mxu0 0.0
    %1112 = vmatpush1.msra.mxu0 0.0
    %1113 = vmatprep.subr.mxu0 0.0
    %1114 = vmatpush1.msra.mxu0 0.0
    %1115 = vmatprep.subr.mxu0 0.0
    %1116 = vmatpush1.msra.mxu0 0.0
    %1117 = vmatprep.subr.mxu0 0.0
    %1118 = vmatpush1.msra.mxu0 0.0
    %1119 = vmatprep.subr.mxu0 0.0
    %1120 = vmatpush1.msra.mxu0 0.0
    %1121 = vmatprep.subr.mxu0 0.0
    %1122 = vmatpush1.msra.mxu0 0.0
    %1123 = vmatprep.subr.mxu0 0.0
    %1124 = vmatpush1.msra.mxu0 0.0
    %1125 = vmatprep.subr.mxu0 0.0
    %1126 = vmatpush1.msra.mxu0 0.0
    %1127 = vmatprep.subr.mxu0 0.0
    %1128 = vmatpush1.msra.mxu0 0.0
    %1129 = vmatprep.subr.mxu0 0.0
    %1130 = vmatpush1.msra.mxu0 0.0
    %1131 = vmatprep.subr.mxu0 0.0
    %1132 = vmatpush1.msra.mxu0 0.0
    %1133 = vmatprep.subr.mxu0 0.0
    %1134 = vmatpush1.msra.mxu0 0.0
    %1135 = vmatprep.subr.mxu0 0.0
    %1136 = vmatpush1.msra.mxu0 0.0
    %1137 = vmatprep.subr.mxu0 0.0
    %1138 = vmatpush1.msra.mxu0 0.0
    %1139 = vmatprep.subr.mxu0 0.0
    %1140 = vmatpush1.msra.mxu0 0.0
    %1141 = vmatprep.subr.mxu0 0.0
    %1142 = vmatpush1.msra.mxu0 0.0
    %1143 = vmatprep.subr.mxu0 0.0
    %1144 = vmatpush1.msra.mxu0 0.0
    %1145 = vmatprep.subr.mxu0 0.0
    %1146 = vmatpush1.msra.mxu0 0.0
    %1147 = vmatprep.subr.mxu0 0.0
    %1148 = vmatpush1.msra.mxu0 0.0
    %1149 = vmatprep.subr.mxu0 0.0
    %1150 = vmatpush1.msra.mxu0 0.0
    %1151 = vmatprep.subr.mxu0 0.0
    %1152 = vmatpush1.msra.mxu0 0.0
    %1153 = vmatprep.subr.mxu0 0.0
    %1154 = vmatpush1.msra.mxu0 0.0
    %1155 = vmatprep.subr.mxu0 0.0
    %1156 = vmatpush1.msra.mxu0 0.0
    %1157 = vmatprep.subr.mxu0 0.0
    %1158 = vmatpush1.msra.mxu0 0.0
    %1159 = vmatprep.subr.mxu0 0.0
    %1160 = vmatpush1.msra.mxu0 0.0
    %1161 = vmatprep.mubr.f32.mxu0 0.0
    %1162 = vmatmul.mubr.f32.gmra.mrb[0].mxu0 %v946
    %v1163 = vpop.f32.mrb[0].mxu0
    %v1164 = vadd.f32 0.0, %v1163
    %v1165 = vpop.f32.mrb[0].mxu0
    %1166 = vdwg.mxu0
    %1167 = vmatprep.subr.mxu0 0.0
    %1168 = vmatpush1.msra.mxu0 %v121
    %1169 = vmatprep.subr.mxu0 0.0
    %1170 = vmatpush1.msra.mxu0 %v122
    %1171 = vmatprep.subr.mxu0 0.0
    %1172 = vmatpush1.msra.mxu0 %v123
    %1173 = vmatprep.subr.mxu0 0.0
    %1174 = vmatpush1.msra.mxu0 %v124
    %1175 = vmatprep.subr.mxu0 0.0
    %1176 = vmatpush1.msra.mxu0 0.0
    %1177 = vmatprep.subr.mxu0 0.0
    %1178 = vmatpush1.msra.mxu0 0.0
    %1179 = vmatprep.subr.mxu0 0.0
    %1180 = vmatpush1.msra.mxu0 0.0
    %1181 = vmatprep.subr.mxu0 0.0
    %1182 = vmatpush1.msra.mxu0 0.0
    %1183 = vmatprep.subr.mxu0 0.0
    %1184 = vmatpush1.msra.mxu0 0.0
    %1185 = vmatprep.subr.mxu0 0.0
    %1186 = vmatpush1.msra.mxu0 0.0
    %1187 = vmatprep.subr.mxu0 0.0
    %1188 = vmatpush1.msra.mxu0 0.0
    %1189 = vmatprep.subr.mxu0 0.0
    %1190 = vmatpush1.msra.mxu0 0.0
    %1191 = vmatprep.subr.mxu0 0.0
    %1192 = vmatpush1.msra.mxu0 0.0
    %1193 = vmatprep.subr.mxu0 0.0
    %1194 = vmatpush1.msra.mxu0 0.0
    %1195 = vmatprep.subr.mxu0 0.0
    %1196 = vmatpush1.msra.mxu0 0.0
    %1197 = vmatprep.subr.mxu0 0.0
    %1198 = vmatpush1.msra.mxu0 0.0
    %1199 = vmatprep.subr.mxu0 0.0
    %1200 = vmatpush1.msra.mxu0 0.0
    %1201 = vmatprep.subr.mxu0 0.0
    %1202 = vmatpush1.msra.mxu0 0.0
    %1203 = vmatprep.subr.mxu0 0.0
    %1204 = vmatpush1.msra.mxu0 0.0
    %1205 = vmatprep.subr.mxu0 0.0
    %1206 = vmatpush1.msra.mxu0 0.0
    %1207 = vmatprep.subr.mxu0 0.0
    %1208 = vmatpush1.msra.mxu0 0.0
    %1209 = vmatprep.subr.mxu0 0.0
    %1210 = vmatpush1.msra.mxu0 0.0
    %1211 = vmatprep.subr.mxu0 0.0
    %1212 = vmatpush1.msra.mxu0 0.0
    %1213 = vmatprep.subr.mxu0 0.0
    %1214 = vmatpush1.msra.mxu0 0.0
    %1215 = vmatprep.subr.mxu0 0.0
    %1216 = vmatpush1.msra.mxu0 0.0
    %1217 = vmatprep.subr.mxu0 0.0
    %1218 = vmatpush1.msra.mxu0 0.0
    %1219 = vmatprep.subr.mxu0 0.0
    %1220 = vmatpush1.msra.mxu0 0.0
    %1221 = vmatprep.subr.mxu0 0.0
    %1222 = vmatpush1.msra.mxu0 0.0
    %1223 = vmatprep.subr.mxu0 0.0
    %1224 = vmatpush1.msra.mxu0 0.0
    %1225 = vmatprep.subr.mxu0 0.0
    %1226 = vmatpush1.msra.mxu0 0.0
    %1227 = vmatprep.subr.mxu0 0.0
    %1228 = vmatpush1.msra.mxu0 0.0
    %1229 = vmatprep.subr.mxu0 0.0
    %1230 = vmatpush1.msra.mxu0 0.0
    %1231 = vmatprep.mubr.f32.mxu0 0.0
    %1232 = vmatmul.mubr.f32.gmra.mrb[0].mxu0 %v1018
    %v1233 = vpop.f32.mrb[0].mxu0
    %v1234 = vadd.f32 %v1164, %v1233
    %v1235 = vpop.f32.mrb[0].mxu0
    %1236 = vdwg.mxu0
    %v1237 = vadd.f32 %v1234, %v167
    %v1238 = vxor.u32 %v1237, 2147483648
    %v1239 = vmul.f32 %v1238, 1.442695
    %v1240 = vpow.pop %v1239
    %v1241 = vadd.f32 %v1240, 1.0
    %v1242 = vrcp.pop %v1241
    %v1243 = vmul.f32 1.0, %v1242
    %1244 = vmatprep.subr.mxu0 0.0
    %1245 = vmatpush1.msra.mxu0 %v145
    %1246 = vmatprep.subr.mxu0 0.0
    %1247 = vmatpush1.msra.mxu0 %v146
    %1248 = vmatprep.subr.mxu0 0.0
    %1249 = vmatpush1.msra.mxu0 %v147
    %1250 = vmatprep.subr.mxu0 0.0
    %1251 = vmatpush1.msra.mxu0 %v148
    %1252 = vmatprep.subr.mxu0 0.0
    %1253 = vmatpush1.msra.mxu0 0.0
    %1254 = vmatprep.subr.mxu0 0.0
    %1255 = vmatpush1.msra.mxu0 0.0
    %1256 = vmatprep.subr.mxu0 0.0
    %1257 = vmatpush1.msra.mxu0 0.0
    %1258 = vmatprep.subr.mxu0 0.0
    %1259 = vmatpush1.msra.mxu0 0.0
    %1260 = vmatprep.subr.mxu0 0.0
    %1261 = vmatpush1.msra.mxu0 0.0
    %1262 = vmatprep.subr.mxu0 0.0
    %1263 = vmatpush1.msra.mxu0 0.0
    %1264 = vmatprep.subr.mxu0 0.0
    %1265 = vmatpush1.msra.mxu0 0.0
    %1266 = vmatprep.subr.mxu0 0.0
    %1267 = vmatpush1.msra.mxu0 0.0
    %1268 = vmatprep.subr.mxu0 0.0
    %1269 = vmatpush1.msra.mxu0 0.0
    %1270 = vmatprep.subr.mxu0 0.0
    %1271 = vmatpush1.msra.mxu0 0.0
    %1272 = vmatprep.subr.mxu0 0.0
    %1273 = vmatpush1.msra.mxu0 0.0
    %1274 = vmatprep.subr.mxu0 0.0
    %1275 = vmatpush1.msra.mxu0 0.0
    %1276 = vmatprep.subr.mxu0 0.0
    %1277 = vmatpush1.msra.mxu0 0.0
    %1278 = vmatprep.subr.mxu0 0.0
    %1279 = vmatpush1.msra.mxu0 0.0
    %1280 = vmatprep.subr.mxu0 0.0
    %1281 = vmatpush1.msra.mxu0 0.0
    %1282 = vmatprep.subr.mxu0 0.0
    %1283 = vmatpush1.msra.mxu0 0.0
    %1284 = vmatprep.subr.mxu0 0.0
    %1285 = vmatpush1.msra.mxu0 0.0
    %1286 = vmatprep.subr.mxu0 0.0
    %1287 = vmatpush1.msra.mxu0 0.0
    %1288 = vmatprep.subr.mxu0 0.0
    %1289 = vmatpush1.msra.mxu0 0.0
    %1290 = vmatprep.subr.mxu0 0.0
    %1291 = vmatpush1.msra.mxu0 0.0
    %1292 = vmatprep.subr.mxu0 0.0
    %1293 = vmatpush1.msra.mxu0 0.0
    %1294 = vmatprep.subr.mxu0 0.0
    %1295 = vmatpush1.msra.mxu0 0.0
    %1296 = vmatprep.subr.mxu0 0.0
    %1297 = vmatpush1.msra.mxu0 0.0
    %1298 = vmatprep.subr.mxu0 0.0
    %1299 = vmatpush1.msra.mxu0 0.0
    %1300 = vmatprep.subr.mxu0 0.0
    %1301 = vmatpush1.msra.mxu0 0.0
    %1302 = vmatprep.subr.mxu0 0.0
    %1303 = vmatpush1.msra.mxu0 0.0
    %1304 = vmatprep.subr.mxu0 0.0
    %1305 = vmatpush1.msra.mxu0 0.0
    %1306 = vmatprep.subr.mxu0 0.0
    %1307 = vmatpush1.msra.mxu0 0.0
    %1308 = vmatprep.mubr.f32.mxu0 0.0
    %1309 = vmatmul.mubr.f32.gmra.mrb[0].mxu0 %v946
    %v1310 = vpop.f32.mrb[0].mxu0
    %v1311 = vadd.f32 0.0, %v1310
    %v1312 = vpop.f32.mrb[0].mxu0
    %1313 = vdwg.mxu0
    %1314 = vmatprep.subr.mxu0 0.0
    %1315 = vmatpush1.msra.mxu0 %v126
    %1316 = vmatprep.subr.mxu0 0.0
    %1317 = vmatpush1.msra.mxu0 %v127
    %1318 = vmatprep.subr.mxu0 0.0
    %1319 = vmatpush1.msra.mxu0 %v128
    %1320 = vmatprep.subr.mxu0 0.0
    %1321 = vmatpush1.msra.mxu0 %v129
    %1322 = vmatprep.subr.mxu0 0.0
    %1323 = vmatpush1.msra.mxu0 0.0
    %1324 = vmatprep.subr.mxu0 0.0
    %1325 = vmatpush1.msra.mxu0 0.0
    %1326 = vmatprep.subr.mxu0 0.0
    %1327 = vmatpush1.msra.mxu0 0.0
    %1328 = vmatprep.subr.mxu0 0.0
    %1329 = vmatpush1.msra.mxu0 0.0
    %1330 = vmatprep.subr.mxu0 0.0
    %1331 = vmatpush1.msra.mxu0 0.0
    %1332 = vmatprep.subr.mxu0 0.0
    %1333 = vmatpush1.msra.mxu0 0.0
    %1334 = vmatprep.subr.mxu0 0.0
    %1335 = vmatpush1.msra.mxu0 0.0
    %1336 = vmatprep.subr.mxu0 0.0
    %1337 = vmatpush1.msra.mxu0 0.0
    %1338 = vmatprep.subr.mxu0 0.0
    %1339 = vmatpush1.msra.mxu0 0.0
    %1340 = vmatprep.subr.mxu0 0.0
    %1341 = vmatpush1.msra.mxu0 0.0
    %1342 = vmatprep.subr.mxu0 0.0
    %1343 = vmatpush1.msra.mxu0 0.0
    %1344 = vmatprep.subr.mxu0 0.0
    %1345 = vmatpush1.msra.mxu0 0.0
    %1346 = vmatprep.subr.mxu0 0.0
    %1347 = vmatpush1.msra.mxu0 0.0
    %1348 = vmatprep.subr.mxu0 0.0
    %1349 = vmatpush1.msra.mxu0 0.0
    %1350 = vmatprep.subr.mxu0 0.0
    %1351 = vmatpush1.msra.mxu0 0.0
    %1352 = vmatprep.subr.mxu0 0.0
    %1353 = vmatpush1.msra.mxu0 0.0
    %1354 = vmatprep.subr.mxu0 0.0
    %1355 = vmatpush1.msra.mxu0 0.0
    %1356 = vmatprep.subr.mxu0 0.0
    %1357 = vmatpush1.msra.mxu0 0.0
    %1358 = vmatprep.subr.mxu0 0.0
    %1359 = vmatpush1.msra.mxu0 0.0
    %1360 = vmatprep.subr.mxu0 0.0
    %1361 = vmatpush1.msra.mxu0 0.0
    %1362 = vmatprep.subr.mxu0 0.0
    %1363 = vmatpush1.msra.mxu0 0.0
    %1364 = vmatprep.subr.mxu0 0.0
    %1365 = vmatpush1.msra.mxu0 0.0
    %1366 = vmatprep.subr.mxu0 0.0
    %1367 = vmatpush1.msra.mxu0 0.0
    %1368 = vmatprep.subr.mxu0 0.0
    %1369 = vmatpush1.msra.mxu0 0.0
    %1370 = vmatprep.subr.mxu0 0.0
    %1371 = vmatpush1.msra.mxu0 0.0
    %1372 = vmatprep.subr.mxu0 0.0
    %1373 = vmatpush1.msra.mxu0 0.0
    %1374 = vmatprep.subr.mxu0 0.0
    %1375 = vmatpush1.msra.mxu0 0.0
    %1376 = vmatprep.subr.mxu0 0.0
    %1377 = vmatpush1.msra.mxu0 0.0
    %1378 = vmatprep.mubr.f32.mxu0 0.0
    %1379 = vmatmul.mubr.f32.gmra.mrb[0].mxu0 %v1018
    %v1380 = vpop.f32.mrb[0].mxu0
    %v1381 = vadd.f32 %v1311, %v1380
    %v1382 = vpop.f32.mrb[0].mxu0
    %1383 = vdwg.mxu0
    %v1384 = vadd.f32 %v1381, %v175
    %v1385 = vtanh.pop %v1384
    %1386 = vmatprep.subr.mxu0 0.0
    %1387 = vmatpush1.msra.mxu0 %v150
    %1388 = vmatprep.subr.mxu0 0.0
    %1389 = vmatpush1.msra.mxu0 %v151
    %1390 = vmatprep.subr.mxu0 0.0
    %1391 = vmatpush1.msra.mxu0 %v152
    %1392 = vmatprep.subr.mxu0 0.0
    %1393 = vmatpush1.msra.mxu0 %v153
    %1394 = vmatprep.subr.mxu0 0.0
    %1395 = vmatpush1.msra.mxu0 0.0
    %1396 = vmatprep.subr.mxu0 0.0
    %1397 = vmatpush1.msra.mxu0 0.0
    %1398 = vmatprep.subr.mxu0 0.0
    %1399 = vmatpush1.msra.mxu0 0.0
    %1400 = vmatprep.subr.mxu0 0.0
    %1401 = vmatpush1.msra.mxu0 0.0
    %1402 = vmatprep.subr.mxu0 0.0
    %1403 = vmatpush1.msra.mxu0 0.0
    %1404 = vmatprep.subr.mxu0 0.0
    %1405 = vmatpush1.msra.mxu0 0.0
    %1406 = vmatprep.subr.mxu0 0.0
    %1407 = vmatpush1.msra.mxu0 0.0
    %1408 = vmatprep.subr.mxu0 0.0
    %1409 = vmatpush1.msra.mxu0 0.0
    %1410 = vmatprep.subr.mxu0 0.0
    %1411 = vmatpush1.msra.mxu0 0.0
    %1412 = vmatprep.subr.mxu0 0.0
    %1413 = vmatpush1.msra.mxu0 0.0
    %1414 = vmatprep.subr.mxu0 0.0
    %1415 = vmatpush1.msra.mxu0 0.0
    %1416 = vmatprep.subr.mxu0 0.0
    %1417 = vmatpush1.msra.mxu0 0.0
    %1418 = vmatprep.subr.mxu0 0.0
    %1419 = vmatpush1.msra.mxu0 0.0
    %1420 = vmatprep.subr.mxu0 0.0
    %1421 = vmatpush1.msra.mxu0 0.0
    %1422 = vmatprep.subr.mxu0 0.0
    %1423 = vmatpush1.msra.mxu0 0.0
    %1424 = vmatprep.subr.mxu0 0.0
    %1425 = vmatpush1.msra.mxu0 0.0
    %1426 = vmatprep.subr.mxu0 0.0
    %1427 = vmatpush1.msra.mxu0 0.0
    %1428 = vmatprep.subr.mxu0 0.0
    %1429 = vmatpush1.msra.mxu0 0.0
    %1430 = vmatprep.subr.mxu0 0.0
    %1431 = vmatpush1.msra.mxu0 0.0
    %1432 = vmatprep.subr.mxu0 0.0
    %1433 = vmatpush1.msra.mxu0 0.0
    %1434 = vmatprep.subr.mxu0 0.0
    %1435 = vmatpush1.msra.mxu0 0.0
    %1436 = vmatprep.subr.mxu0 0.0
    %1437 = vmatpush1.msra.mxu0 0.0
    %1438 = vmatprep.subr.mxu0 0.0
    %1439 = vmatpush1.msra.mxu0 0.0
    %1440 = vmatprep.subr.mxu0 0.0
    %1441 = vmatpush1.msra.mxu0 0.0
    %1442 = vmatprep.subr.mxu0 0.0
    %1443 = vmatpush1.msra.mxu0 0.0
    %1444 = vmatprep.subr.mxu0 0.0
    %1445 = vmatpush1.msra.mxu0 0.0
    %1446 = vmatprep.subr.mxu0 0.0
    %1447 = vmatpush1.msra.mxu0 0.0
    %1448 = vmatprep.subr.mxu0 0.0
    %1449 = vmatpush1.msra.mxu0 0.0
    %1450 = vmatprep.mubr.f32.mxu0 0.0
    %1451 = vmatmul.mubr.f32.gmra.mrb[0].mxu0 %v946
    %v1452 = vpop.f32.mrb[0].mxu0
    %v1453 = vadd.f32 0.0, %v1452
    %v1454 = vpop.f32.mrb[0].mxu0
    %1455 = vdwg.mxu0
    %1456 = vmatprep.subr.mxu0 0.0
    %1457 = vmatpush1.msra.mxu0 %v131
    %1458 = vmatprep.subr.mxu0 0.0
    %1459 = vmatpush1.msra.mxu0 %v132
    %1460 = vmatprep.subr.mxu0 0.0
    %1461 = vmatpush1.msra.mxu0 %v133
    %1462 = vmatprep.subr.mxu0 0.0
    %1463 = vmatpush1.msra.mxu0 %v134
    %1464 = vmatprep.subr.mxu0 0.0
    %1465 = vmatpush1.msra.mxu0 0.0
    %1466 = vmatprep.subr.mxu0 0.0
    %1467 = vmatpush1.msra.mxu0 0.0
    %1468 = vmatprep.subr.mxu0 0.0
    %1469 = vmatpush1.msra.mxu0 0.0
    %1470 = vmatprep.subr.mxu0 0.0
    %1471 = vmatpush1.msra.mxu0 0.0
    %1472 = vmatprep.subr.mxu0 0.0
    %1473 = vmatpush1.msra.mxu0 0.0
    %1474 = vmatprep.subr.mxu0 0.0
    %1475 = vmatpush1.msra.mxu0 0.0
    %1476 = vmatprep.subr.mxu0 0.0
    %1477 = vmatpush1.msra.mxu0 0.0
    %1478 = vmatprep.subr.mxu0 0.0
    %1479 = vmatpush1.msra.mxu0 0.0
    %1480 = vmatprep.subr.mxu0 0.0
    %1481 = vmatpush1.msra.mxu0 0.0
    %1482 = vmatprep.subr.mxu0 0.0
    %1483 = vmatpush1.msra.mxu0 0.0
    %1484 = vmatprep.subr.mxu0 0.0
    %1485 = vmatpush1.msra.mxu0 0.0
    %1486 = vmatprep.subr.mxu0 0.0
    %1487 = vmatpush1.msra.mxu0 0.0
    %1488 = vmatprep.subr.mxu0 0.0
    %1489 = vmatpush1.msra.mxu0 0.0
    %1490 = vmatprep.subr.mxu0 0.0
    %1491 = vmatpush1.msra.mxu0 0.0
    %1492 = vmatprep.subr.mxu0 0.0
    %1493 = vmatpush1.msra.mxu0 0.0
    %1494 = vmatprep.subr.mxu0 0.0
    %1495 = vmatpush1.msra.mxu0 0.0
    %1496 = vmatprep.subr.mxu0 0.0
    %1497 = vmatpush1.msra.mxu0 0.0
    %1498 = vmatprep.subr.mxu0 0.0
    %1499 = vmatpush1.msra.mxu0 0.0
    %1500 = vmatprep.subr.mxu0 0.0
    %1501 = vmatpush1.msra.mxu0 0.0
    %1502 = vmatprep.subr.mxu0 0.0
    %1503 = vmatpush1.msra.mxu0 0.0
    %1504 = vmatprep.subr.mxu0 0.0
    %1505 = vmatpush1.msra.mxu0 0.0
    %1506 = vmatprep.subr.mxu0 0.0
    %1507 = vmatpush1.msra.mxu0 0.0
    %1508 = vmatprep.subr.mxu0 0.0
    %1509 = vmatpush1.msra.mxu0 0.0
    %1510 = vmatprep.subr.mxu0 0.0
    %1511 = vmatpush1.msra.mxu0 0.0
    %1512 = vmatprep.subr.mxu0 0.0
    %1513 = vmatpush1.msra.mxu0 0.0
    %1514 = vmatprep.subr.mxu0 0.0
    %1515 = vmatpush1.msra.mxu0 0.0
    %1516 = vmatprep.subr.mxu0 0.0
    %1517 = vmatpush1.msra.mxu0 0.0
    %1518 = vmatprep.subr.mxu0 0.0
    %1519 = vmatpush1.msra.mxu0 0.0
    %1520 = vmatprep.mubr.f32.mxu0 0.0
    %1521 = vmatmul.mubr.f32.gmra.mrb[0].mxu0 %v1018
    %v1522 = vpop.f32.mrb[0].mxu0
    %v1523 = vadd.f32 %v1453, %v1522
    %v1524 = vpop.f32.mrb[0].mxu0
    %1525 = vdwg.mxu0
    %v1526 = vadd.f32 %v1523, %v183
    %v1527 = vxor.u32 %v1526, 2147483648
    %v1528 = vmul.f32 %v1527, 1.442695
    %v1529 = vpow.pop %v1528
    %v1530 = vadd.f32 %v1529, 1.0
    %v1531 = vrcp.pop %v1530
    %v1532 = vmul.f32 1.0, %v1531
    %v1533 = vmul.f32 %v1243, %v849
    %v1534 = vmul.f32 %v1096, %v1385
    %v1535 = vadd.f32 %v1533, %v1534
    %v1536 = vtanh.pop %v1535
    %v1537 = vmul.f32 %v1532, %v1536
    %v1540 = vunpack.c.l.s4 1966171168
    %v1541 = vunpack.c.0.s8 %v1540
    %v1542 = vlaneseq
    %v1543 = vshrl.u32 %v1542, 7
    %v1544 = vsub.s32 %v1541, %v1543
    %v1545 = vrot.slane %v1537, %v1544
    %v1546 = vcombine.high %v1545, %v1545
    %v1548 = vunpack.c.l.s4 1966171168
    %v1549 = vunpack.c.0.s8 %v1548
    %v1550 = vlaneseq
    %v1551 = vshrl.u32 %v1550, 7
    %v1552 = vsub.s32 %v1549, %v1551
    %v1553 = vrot.slane %v1545, %v1552
    %v1555 = vunpack.c.l.s4 1966171168
    %v1556 = vunpack.c.0.s8 %v1555
    %v1557 = vlaneseq
    %v1558 = vshrl.u32 %v1557, 7
    %v1559 = vsub.s32 %v1556, %v1558
    %v1560 = vrot.slane %v1546, %v1559
    %v1561 = vlaneseq
    %v1562 = vshrl.u32 %v1561, 7
    %v1563 = vsub.s32 0, %v1562
    %v1564 = vrot.slane %v1553, %v1563
    %v1565 = vlaneseq
    %v1566 = vshrl.u32 %v1565, 7
    %v1567 = vsub.s32 0, %v1566
    %v1568 = vrot.slane %v1560, %v1567
    %v1571 = vmul.f32 %v194, %v1564
    %v1572 = vmul.f32 %v195, %v1568
    %v1573 = vsel %vm198, %v1571, 0.0
    %1574 = vadd.xlane.f32.xlu0 %v1573
    %v1575 = vpop.xlane.xlu0 %1574
    %v1576 = vsel %vm198, %v1572, 0.0
    %1577 = vadd.xlane.f32.xlu0 %v1576
    %v1578 = vpop.xlane.xlu0 %1577
    %v1579 = vrot.slane %v1575, 4
    %v1580 = vmax.f32 %v1575, %v1579
    %v1581 = vrot.slane %v1580, 2
    %v1582 = vmax.f32 %v1580, %v1581
    %v1583 = vrot.slane %v1582, 1
    %v1584 = vmax.f32 %v1582, %v1583
    %v1585 = vrot.slane %v1578, 4
    %v1586 = vmax.f32 %v1578, %v1585
    %v1587 = vrot.slane %v1586, 2
    %v1588 = vmax.f32 %v1586, %v1587
    %v1589 = vrot.slane %v1588, 1
    %v1590 = vmax.f32 %v1588, %v1589
    %v1591 = vsub.f32 %v1575, %v1584
    %v1592 = vsub.f32 %v1578, %v1590
    %v1593 = vmul.f32 %v1591, 1.442695
    %v1594 = vpow.pop %v1593
    %v1595 = vmul.f32 %v1592, 1.442695
    %v1596 = vpow.pop %v1595
    %v1597 = vrot.slane %v1594, 4
    %v1598 = vadd.f32 %v1594, %v1597
    %v1599 = vrot.slane %v1598, 2
    %v1600 = vadd.f32 %v1598, %v1599
    %v1601 = vrot.slane %v1600, 1
    %v1602 = vadd.f32 %v1600, %v1601
    %v1603 = vrot.slane %v1596, 4
    %v1604 = vadd.f32 %v1596, %v1603
    %v1605 = vrot.slane %v1604, 2
    %v1606 = vadd.f32 %v1604, %v1605
    %v1607 = vrot.slane %v1606, 1
    %v1608 = vadd.f32 %v1606, %v1607
    %v1609 = vmul.f32 %v1594, %v194
    %v1610 = vmul.f32 %v1596, %v195
    %v1611 = vsel %vm198, %v1609, 0.0
    %v1612 = vrot.slane %v1611, 4
    %v1613 = vadd.f32 %v1611, %v1612
    %v1614 = vrot.slane %v1613, 2
    %v1615 = vadd.f32 %v1613, %v1614
    %v1616 = vrot.slane %v1615, 1
    %v1617 = vadd.f32 %v1615, %v1616
    %v1618 = vsel %vm198, %v1610, 0.0
    %v1619 = vrot.slane %v1618, 4
    %v1620 = vadd.f32 %v1618, %v1619
    %v1621 = vrot.slane %v1620, 2
    %v1622 = vadd.f32 %v1620, %v1621
    %v1623 = vrot.slane %v1622, 1
    %v1624 = vadd.f32 %v1622, %v1623
    %v1625 = vrcp.pop %v1602
    %v1626 = vrcp.pop %v1608
    %v1627 = vmul.f32 %v1617, %v1625
    %v1628 = vmul.f32 %v1624, %v1626
    %v1629 = vpack.c.bf16 %v1537, %v1537
    %v1630 = vld [vmem:[#allocation10] sm:$0xf]
    %v1631 = vld [vmem:[#allocation10 + $0x4] sm:$0xf]
    %v1632 = vld [vmem:[#allocation10 + $0x8] sm:$0xf]
    %v1633 = vld [vmem:[#allocation10 + $0xc] sm:$0xf]
    %v1634 = vpack.c.bf16 %v1627, %v1627
    %v1635 = vpack.c.bf16 %v1628, %v1628
    %v1636 = vld [vmem:[#allocation11] sm:$0xf]
    %v1637 = vld [vmem:[#allocation11 + $0x4] sm:$0xf]
    %v1638 = vld [vmem:[#allocation11 + $0x8] sm:$0xf]
    %v1639 = vld [vmem:[#allocation11 + $0xc] sm:$0xf]
    %v1642 = vunpack.c.l.b16 %v1634
    %v1643 = vunpack.c.l.b16 %v1635
    %v1644 = vsel %vm257, %v1643, %v1642
    %v1645 = vpack.c.b16 %v1644, %v1644
    %v1650 = vunpack.c.l.b16 %v1636
    %v1651 = vunpack.c.l.b16 %v1637
    %v1652 = vunpack.c.l.b16 %v1638
    %v1653 = vunpack.c.l.b16 %v1639
    %v1654 = vpack.c.b16 %v1651, %v1650
    %v1655 = vpack.c.b16 %v1653, %v1652
    %v1659 = vsel %vm198, %v1645, 0
    %1661 = vmatprep.subr.bf16.mxu0 0
    %1662 = vmatpush1.bf16.msra.mxu0 %v1654
    %1663 = vmatprep.subr.bf16.mxu0 0
    %1664 = vmatpush1.bf16.msra.mxu0 %v1655
    %1665 = vmatprep.subr.bf16.mxu0 0
    %1666 = vmatpush1.bf16.msra.mxu0 0
    %1667 = vmatprep.subr.bf16.mxu0 0
    %1668 = vmatpush1.bf16.msra.mxu0 0
    %1669 = vmatprep.subr.bf16.mxu0 0
    %1670 = vmatpush1.bf16.msra.mxu0 0
    %1671 = vmatprep.subr.bf16.mxu0 0
    %1672 = vmatpush1.bf16.msra.mxu0 0
    %1673 = vmatprep.subr.bf16.mxu0 0
    %1674 = vmatpush1.bf16.msra.mxu0 0
    %1675 = vmatprep.subr.bf16.mxu0 0
    %1676 = vmatpush1.bf16.msra.mxu0 0
    %1677 = vmatprep.subr.bf16.mxu0 0
    %1678 = vmatpush1.bf16.msra.mxu0 0
    %1679 = vmatprep.subr.bf16.mxu0 0
    %1680 = vmatpush1.bf16.msra.mxu0 0
    %1681 = vmatprep.subr.bf16.mxu0 0
    %1682 = vmatpush1.bf16.msra.mxu0 0
    %1683 = vmatprep.subr.bf16.mxu0 0
    %1684 = vmatpush1.bf16.msra.mxu0 0
    %1685 = vmatprep.subr.bf16.mxu0 0
    %1686 = vmatpush1.bf16.msra.mxu0 0
    %1687 = vmatprep.subr.bf16.mxu0 0
    %1688 = vmatpush1.bf16.msra.mxu0 0
    %1689 = vmatprep.subr.bf16.mxu0 0
    %1690 = vmatpush1.bf16.msra.mxu0 0
    %1691 = vmatprep.subr.bf16.mxu0 0
    %1692 = vmatpush1.bf16.msra.mxu0 0
    %1693 = vmatprep.mubr.bf16.mxu0 0
    %1694 = vmatmul.mubr.bf16.gmra.mrb[0].mxu0 %v1659
    %v1695 = vpop.f32.mrb[0].mxu0
    %v1696 = vadd.f32 0.0, %v1695
    %v1697 = vpop.f32.mrb[0].mxu0
    %v1698 = vpop.f32.mrb[0].mxu0
    %v1699 = vpop.f32.mrb[0].mxu0
    %1700 = vdwg.mxu0
    %v1705 = vunpack.c.l.b16 %v1630
    %v1706 = vunpack.c.l.b16 %v1631
    %v1707 = vunpack.c.l.b16 %v1632
    %v1708 = vunpack.c.l.b16 %v1633
    %v1709 = vpack.c.b16 %v1706, %v1705
    %v1710 = vpack.c.b16 %v1708, %v1707
    %v1714 = vsel %vm198, %v1629, 0
    %1716 = vmatprep.subr.bf16.mxu0 0
    %1717 = vmatpush1.bf16.msra.mxu0 %v1709
    %1718 = vmatprep.subr.bf16.mxu0 0
    %1719 = vmatpush1.bf16.msra.mxu0 %v1710
    %1720 = vmatprep.subr.bf16.mxu0 0
    %1721 = vmatpush1.bf16.msra.mxu0 0
    %1722 = vmatprep.subr.bf16.mxu0 0
    %1723 = vmatpush1.bf16.msra.mxu0 0
    %1724 = vmatprep.subr.bf16.mxu0 0
    %1725 = vmatpush1.bf16.msra.mxu0 0
    %1726 = vmatprep.subr.bf16.mxu0 0
    %1727 = vmatpush1.bf16.msra.mxu0 0
    %1728 = vmatprep.subr.bf16.mxu0 0
    %1729 = vmatpush1.bf16.msra.mxu0 0
    %1730 = vmatprep.subr.bf16.mxu0 0
    %1731 = vmatpush1.bf16.msra.mxu0 0
    %1732 = vmatprep.subr.bf16.mxu0 0
    %1733 = vmatpush1.bf16.msra.mxu0 0
    %1734 = vmatprep.subr.bf16.mxu0 0
    %1735 = vmatpush1.bf16.msra.mxu0 0
    %1736 = vmatprep.subr.bf16.mxu0 0
    %1737 = vmatpush1.bf16.msra.mxu0 0
    %1738 = vmatprep.subr.bf16.mxu0 0
    %1739 = vmatpush1.bf16.msra.mxu0 0
    %1740 = vmatprep.subr.bf16.mxu0 0
    %1741 = vmatpush1.bf16.msra.mxu0 0
    %1742 = vmatprep.subr.bf16.mxu0 0
    %1743 = vmatpush1.bf16.msra.mxu0 0
    %1744 = vmatprep.subr.bf16.mxu0 0
    %1745 = vmatpush1.bf16.msra.mxu0 0
    %1746 = vmatprep.subr.bf16.mxu0 0
    %1747 = vmatpush1.bf16.msra.mxu0 0
    %1748 = vmatprep.mubr.bf16.mxu0 0
    %1749 = vmatmul.mubr.bf16.gmra.mrb[0].mxu0 %v1714
    %v1750 = vpop.f32.mrb[0].mxu0
    %v1751 = vadd.f32 %v1696, %v1750
    %v1752 = vpop.f32.mrb[0].mxu0
    %v1753 = vpop.f32.mrb[0].mxu0
    %v1754 = vpop.f32.mrb[0].mxu0
    %1755 = vdwg.mxu0
    %v1756 = vld [vmem:[%s8] sm:$0x1]
    %v1758 = vlaneseq
    %v1759 = vshrl.u32 %v1758, 7
    %v1760 = vsub.s32 0, %v1759
    %v1761 = vrot.slane %v1756, %v1760
    %v1763 = vadd.f32 %v1751, %v1761
    %v1764 = vld [vmem:[%s5] sm:$0xf]
    %v1765 = vld [vmem:[%s5 + $0x4] sm:$0xf]
    %v1766 = vld [vmem:[%s5 + $0x8] sm:$0xf]
    %v1767 = vld [vmem:[%s5 + $0xc] sm:$0xf]
    %v1768 = vpack.c.bf16 %v194, %v194
    %v1769 = vpack.c.bf16 %v195, %v195
    %v1772 = vunpack.c.l.b16 %v1768
    %v1773 = vunpack.c.l.b16 %v1769
    %v1774 = vrot.slane %v1773, 7
    %v1775 = vsel %vm257, %v1774, %v1772
    %v1776 = vpack.c.b16 %v1775, %v1775
    %v1781 = vunpack.c.l.b16 %v1764
    %v1782 = vunpack.c.l.b16 %v1765
    %v1783 = vunpack.c.l.b16 %v1766
    %v1784 = vunpack.c.l.b16 %v1767
    %v1785 = vpack.c.b16 %v1782, %v1781
    %v1786 = vpack.c.b16 %v1784, %v1783
    %v1790 = vsel %vm198, %v1776, 0
    %1792 = vmatprep.subr.bf16.mxu0 0
    %1793 = vmatpush1.bf16.msra.mxu0 %v1785
    %1794 = vmatprep.subr.bf16.mxu0 0
    %1795 = vmatpush1.bf16.msra.mxu0 %v1786
    %1796 = vmatprep.subr.bf16.mxu0 0
    %1797 = vmatpush1.bf16.msra.mxu0 0
    %1798 = vmatprep.subr.bf16.mxu0 0
    %1799 = vmatpush1.bf16.msra.mxu0 0
    %1800 = vmatprep.subr.bf16.mxu0 0
    %1801 = vmatpush1.bf16.msra.mxu0 0
    %1802 = vmatprep.subr.bf16.mxu0 0
    %1803 = vmatpush1.bf16.msra.mxu0 0
    %1804 = vmatprep.subr.bf16.mxu0 0
    %1805 = vmatpush1.bf16.msra.mxu0 0
    %1806 = vmatprep.subr.bf16.mxu0 0
    %1807 = vmatpush1.bf16.msra.mxu0 0
    %1808 = vmatprep.subr.bf16.mxu0 0
    %1809 = vmatpush1.bf16.msra.mxu0 0
    %1810 = vmatprep.subr.bf16.mxu0 0
    %1811 = vmatpush1.bf16.msra.mxu0 0
    %1812 = vmatprep.subr.bf16.mxu0 0
    %1813 = vmatpush1.bf16.msra.mxu0 0
    %1814 = vmatprep.subr.bf16.mxu0 0
    %1815 = vmatpush1.bf16.msra.mxu0 0
    %1816 = vmatprep.subr.bf16.mxu0 0
    %1817 = vmatpush1.bf16.msra.mxu0 0
    %1818 = vmatprep.subr.bf16.mxu0 0
    %1819 = vmatpush1.bf16.msra.mxu0 0
    %1820 = vmatprep.subr.bf16.mxu0 0
    %1821 = vmatpush1.bf16.msra.mxu0 0
    %1822 = vmatprep.subr.bf16.mxu0 0
    %1823 = vmatpush1.bf16.msra.mxu0 0
    %1824 = vmatprep.mubr.bf16.mxu0 0
    %1825 = vmatmul.mubr.bf16.gmra.mrb[0].mxu0 %v1790
    %v1826 = vpop.f32.mrb[0].mxu0
    %v1827 = vadd.f32 %v1763, %v1826
    %v1828 = vpop.f32.mrb[0].mxu0
    %v1829 = vpop.f32.mrb[0].mxu0
    %v1830 = vpop.f32.mrb[0].mxu0
    %1831 = vdwg.mxu0
    %vm1832 = vcmp.ge.f32.partialorder %v1827, 0.0
    %v1833 = vmul.f32 %v1827, 0.01
    %v1834 = vsel %vm1832, %v1827, %v1833
    %v1835 = vrot.slane %v1772, 1
    %v1836 = vsel %vm257, %v1773, %v1835
    %v1837 = vpack.c.b16 %v1836, %v1836
    %v1839 = vsel %vm198, %v1837, 0
    %1841 = vmatprep.subr.bf16.mxu0 0
    %1842 = vmatpush1.bf16.msra.mxu0 %v1785
    %1843 = vmatprep.subr.bf16.mxu0 0
    %1844 = vmatpush1.bf16.msra.mxu0 %v1786
    %1845 = vmatprep.subr.bf16.mxu0 0
    %1846 = vmatpush1.bf16.msra.mxu0 0
    %1847 = vmatprep.subr.bf16.mxu0 0
    %1848 = vmatpush1.bf16.msra.mxu0 0
    %1849 = vmatprep.subr.bf16.mxu0 0
    %1850 = vmatpush1.bf16.msra.mxu0 0
    %1851 = vmatprep.subr.bf16.mxu0 0
    %1852 = vmatpush1.bf16.msra.mxu0 0
    %1853 = vmatprep.subr.bf16.mxu0 0
    %1854 = vmatpush1.bf16.msra.mxu0 0
    %1855 = vmatprep.subr.bf16.mxu0 0
    %1856 = vmatpush1.bf16.msra.mxu0 0
    %1857 = vmatprep.subr.bf16.mxu0 0
    %1858 = vmatpush1.bf16.msra.mxu0 0
    %1859 = vmatprep.subr.bf16.mxu0 0
    %1860 = vmatpush1.bf16.msra.mxu0 0
    %1861 = vmatprep.subr.bf16.mxu0 0
    %1862 = vmatpush1.bf16.msra.mxu0 0
    %1863 = vmatprep.subr.bf16.mxu0 0
    %1864 = vmatpush1.bf16.msra.mxu0 0
    %1865 = vmatprep.subr.bf16.mxu0 0
    %1866 = vmatpush1.bf16.msra.mxu0 0
    %1867 = vmatprep.subr.bf16.mxu0 0
    %1868 = vmatpush1.bf16.msra.mxu0 0
    %1869 = vmatprep.subr.bf16.mxu0 0
    %1870 = vmatpush1.bf16.msra.mxu0 0
    %1871 = vmatprep.subr.bf16.mxu0 0
    %1872 = vmatpush1.bf16.msra.mxu0 0
    %1873 = vmatprep.mubr.bf16.mxu0 0
    %1874 = vmatmul.mubr.bf16.gmra.mrb[0].mxu0 %v1839
    %v1875 = vpop.f32.mrb[0].mxu0
    %v1876 = vadd.f32 %v1763, %v1875
    %v1877 = vpop.f32.mrb[0].mxu0
    %v1878 = vpop.f32.mrb[0].mxu0
    %v1879 = vpop.f32.mrb[0].mxu0
    %1880 = vdwg.mxu0
    %vm1881 = vcmp.ge.f32.partialorder %v1876, 0.0
    %v1882 = vmul.f32 %v1876, 0.01
    %v1883 = vsel %vm1881, %v1876, %v1882
    %v1884 = vrot.slane %v1772, 2
    %v1885 = vrot.slane %v1773, 1
    %v1886 = vsel %vm257, %v1885, %v1884
    %v1887 = vpack.c.b16 %v1886, %v1886
    %v1889 = vsel %vm198, %v1887, 0
    %1891 = vmatprep.subr.bf16.mxu0 0
    %1892 = vmatpush1.bf16.msra.mxu0 %v1785
    %1893 = vmatprep.subr.bf16.mxu0 0
    %1894 = vmatpush1.bf16.msra.mxu0 %v1786
    %1895 = vmatprep.subr.bf16.mxu0 0
    %1896 = vmatpush1.bf16.msra.mxu0 0
    %1897 = vmatprep.subr.bf16.mxu0 0
    %1898 = vmatpush1.bf16.msra.mxu0 0
    %1899 = vmatprep.subr.bf16.mxu0 0
    %1900 = vmatpush1.bf16.msra.mxu0 0
    %1901 = vmatprep.subr.bf16.mxu0 0
    %1902 = vmatpush1.bf16.msra.mxu0 0
    %1903 = vmatprep.subr.bf16.mxu0 0
    %1904 = vmatpush1.bf16.msra.mxu0 0
    %1905 = vmatprep.subr.bf16.mxu0 0
    %1906 = vmatpush1.bf16.msra.mxu0 0
    %1907 = vmatprep.subr.bf16.mxu0 0
    %1908 = vmatpush1.bf16.msra.mxu0 0
    %1909 = vmatprep.subr.bf16.mxu0 0
    %1910 = vmatpush1.bf16.msra.mxu0 0
    %1911 = vmatprep.subr.bf16.mxu0 0
    %1912 = vmatpush1.bf16.msra.mxu0 0
    %1913 = vmatprep.subr.bf16.mxu0 0
    %1914 = vmatpush1.bf16.msra.mxu0 0
    %1915 = vmatprep.subr.bf16.mxu0 0
    %1916 = vmatpush1.bf16.msra.mxu0 0
    %1917 = vmatprep.subr.bf16.mxu0 0
    %1918 = vmatpush1.bf16.msra.mxu0 0
    %1919 = vmatprep.subr.bf16.mxu0 0
    %1920 = vmatpush1.bf16.msra.mxu0 0
    %1921 = vmatprep.subr.bf16.mxu0 0
    %1922 = vmatpush1.bf16.msra.mxu0 0
    %1923 = vmatprep.mubr.bf16.mxu0 0
    %1924 = vmatmul.mubr.bf16.gmra.mrb[0].mxu0 %v1889
    %v1925 = vpop.f32.mrb[0].mxu0
    %v1926 = vadd.f32 %v1763, %v1925
    %v1927 = vpop.f32.mrb[0].mxu0
    %v1928 = vpop.f32.mrb[0].mxu0
    %v1929 = vpop.f32.mrb[0].mxu0
    %1930 = vdwg.mxu0
    %vm1931 = vcmp.ge.f32.partialorder %v1926, 0.0
    %v1932 = vmul.f32 %v1926, 0.01
    %v1933 = vsel %vm1931, %v1926, %v1932
    %v1934 = vrot.slane %v1772, 3
    %v1935 = vrot.slane %v1773, 2
    %v1936 = vsel %vm257, %v1935, %v1934
    %v1937 = vpack.c.b16 %v1936, %v1936
    %v1939 = vsel %vm198, %v1937, 0
    %1941 = vmatprep.subr.bf16.mxu0 0
    %1942 = vmatpush1.bf16.msra.mxu0 %v1785
    %1943 = vmatprep.subr.bf16.mxu0 0
    %1944 = vmatpush1.bf16.msra.mxu0 %v1786
    %1945 = vmatprep.subr.bf16.mxu0 0
    %1946 = vmatpush1.bf16.msra.mxu0 0
    %1947 = vmatprep.subr.bf16.mxu0 0
    %1948 = vmatpush1.bf16.msra.mxu0 0
    %1949 = vmatprep.subr.bf16.mxu0 0
    %1950 = vmatpush1.bf16.msra.mxu0 0
    %1951 = vmatprep.subr.bf16.mxu0 0
    %1952 = vmatpush1.bf16.msra.mxu0 0
    %1953 = vmatprep.subr.bf16.mxu0 0
    %1954 = vmatpush1.bf16.msra.mxu0 0
    %1955 = vmatprep.subr.bf16.mxu0 0
    %1956 = vmatpush1.bf16.msra.mxu0 0
    %1957 = vmatprep.subr.bf16.mxu0 0
    %1958 = vmatpush1.bf16.msra.mxu0 0
    %1959 = vmatprep.subr.bf16.mxu0 0
    %1960 = vmatpush1.bf16.msra.mxu0 0
    %1961 = vmatprep.subr.bf16.mxu0 0
    %1962 = vmatpush1.bf16.msra.mxu0 0
    %1963 = vmatprep.subr.bf16.mxu0 0
    %1964 = vmatpush1.bf16.msra.mxu0 0
    %1965 = vmatprep.subr.bf16.mxu0 0
    %1966 = vmatpush1.bf16.msra.mxu0 0
    %1967 = vmatprep.subr.bf16.mxu0 0
    %1968 = vmatpush1.bf16.msra.mxu0 0
    %1969 = vmatprep.subr.bf16.mxu0 0
    %1970 = vmatpush1.bf16.msra.mxu0 0
    %1971 = vmatprep.subr.bf16.mxu0 0
    %1972 = vmatpush1.bf16.msra.mxu0 0
    %1973 = vmatprep.mubr.bf16.mxu0 0
    %1974 = vmatmul.mubr.bf16.gmra.mrb[0].mxu0 %v1939
    %v1975 = vpop.f32.mrb[0].mxu0
    %v1976 = vadd.f32 %v1763, %v1975
    %v1977 = vpop.f32.mrb[0].mxu0
    %v1978 = vpop.f32.mrb[0].mxu0
    %v1979 = vpop.f32.mrb[0].mxu0
    %1980 = vdwg.mxu0
    %vm1981 = vcmp.ge.f32.partialorder %v1976, 0.0
    %v1982 = vmul.f32 %v1976, 0.01
    %v1983 = vsel %vm1981, %v1976, %v1982
    %v1984 = vrot.slane %v1772, 4
    %v1985 = vrot.slane %v1773, 3
    %v1986 = vsel %vm257, %v1985, %v1984
    %v1987 = vpack.c.b16 %v1986, %v1986
    %v1989 = vsel %vm198, %v1987, 0
    %1991 = vmatprep.subr.bf16.mxu0 0
    %1992 = vmatpush1.bf16.msra.mxu0 %v1785
    %1993 = vmatprep.subr.bf16.mxu0 0
    %1994 = vmatpush1.bf16.msra.mxu0 %v1786
    %1995 = vmatprep.subr.bf16.mxu0 0
    %1996 = vmatpush1.bf16.msra.mxu0 0
    %1997 = vmatprep.subr.bf16.mxu0 0
    %1998 = vmatpush1.bf16.msra.mxu0 0
    %1999 = vmatprep.subr.bf16.mxu0 0
    %2000 = vmatpush1.bf16.msra.mxu0 0
    %2001 = vmatprep.subr.bf16.mxu0 0
    %2002 = vmatpush1.bf16.msra.mxu0 0
    %2003 = vmatprep.subr.bf16.mxu0 0
    %2004 = vmatpush1.bf16.msra.mxu0 0
    %2005 = vmatprep.subr.bf16.mxu0 0
    %2006 = vmatpush1.bf16.msra.mxu0 0
    %2007 = vmatprep.subr.bf16.mxu0 0
    %2008 = vmatpush1.bf16.msra.mxu0 0
    %2009 = vmatprep.subr.bf16.mxu0 0
    %2010 = vmatpush1.bf16.msra.mxu0 0
    %2011 = vmatprep.subr.bf16.mxu0 0
    %2012 = vmatpush1.bf16.msra.mxu0 0
    %2013 = vmatprep.subr.bf16.mxu0 0
    %2014 = vmatpush1.bf16.msra.mxu0 0
    %2015 = vmatprep.subr.bf16.mxu0 0
    %2016 = vmatpush1.bf16.msra.mxu0 0
    %2017 = vmatprep.subr.bf16.mxu0 0
    %2018 = vmatpush1.bf16.msra.mxu0 0
    %2019 = vmatprep.subr.bf16.mxu0 0
    %2020 = vmatpush1.bf16.msra.mxu0 0
    %2021 = vmatprep.subr.bf16.mxu0 0
    %2022 = vmatpush1.bf16.msra.mxu0 0
    %2023 = vmatprep.mubr.bf16.mxu0 0
    %2024 = vmatmul.mubr.bf16.gmra.mrb[0].mxu0 %v1989
    %v2025 = vpop.f32.mrb[0].mxu0
    %v2026 = vadd.f32 %v1763, %v2025
    %v2027 = vpop.f32.mrb[0].mxu0
    %v2028 = vpop.f32.mrb[0].mxu0
    %v2029 = vpop.f32.mrb[0].mxu0
    %2030 = vdwg.mxu0
    %vm2031 = vcmp.ge.f32.partialorder %v2026, 0.0
    %v2032 = vmul.f32 %v2026, 0.01
    %v2033 = vsel %vm2031, %v2026, %v2032
    %v2034 = vrot.slane %v1772, 5
    %v2035 = vrot.slane %v1773, 4
    %v2036 = vsel %vm257, %v2035, %v2034
    %v2037 = vpack.c.b16 %v2036, %v2036
    %v2039 = vsel %vm198, %v2037, 0
    %2041 = vmatprep.subr.bf16.mxu0 0
    %2042 = vmatpush1.bf16.msra.mxu0 %v1785
    %2043 = vmatprep.subr.bf16.mxu0 0
    %2044 = vmatpush1.bf16.msra.mxu0 %v1786
    %2045 = vmatprep.subr.bf16.mxu0 0
    %2046 = vmatpush1.bf16.msra.mxu0 0
    %2047 = vmatprep.subr.bf16.mxu0 0
    %2048 = vmatpush1.bf16.msra.mxu0 0
    %2049 = vmatprep.subr.bf16.mxu0 0
    %2050 = vmatpush1.bf16.msra.mxu0 0
    %2051 = vmatprep.subr.bf16.mxu0 0
    %2052 = vmatpush1.bf16.msra.mxu0 0
    %2053 = vmatprep.subr.bf16.mxu0 0
    %2054 = vmatpush1.bf16.msra.mxu0 0
    %2055 = vmatprep.subr.bf16.mxu0 0
    %2056 = vmatpush1.bf16.msra.mxu0 0
    %2057 = vmatprep.subr.bf16.mxu0 0
    %2058 = vmatpush1.bf16.msra.mxu0 0
    %2059 = vmatprep.subr.bf16.mxu0 0
    %2060 = vmatpush1.bf16.msra.mxu0 0
    %2061 = vmatprep.subr.bf16.mxu0 0
    %2062 = vmatpush1.bf16.msra.mxu0 0
    %2063 = vmatprep.subr.bf16.mxu0 0
    %2064 = vmatpush1.bf16.msra.mxu0 0
    %2065 = vmatprep.subr.bf16.mxu0 0
    %2066 = vmatpush1.bf16.msra.mxu0 0
    %2067 = vmatprep.subr.bf16.mxu0 0
    %2068 = vmatpush1.bf16.msra.mxu0 0
    %2069 = vmatprep.subr.bf16.mxu0 0
    %2070 = vmatpush1.bf16.msra.mxu0 0
    %2071 = vmatprep.subr.bf16.mxu0 0
    %2072 = vmatpush1.bf16.msra.mxu0 0
    %2073 = vmatprep.mubr.bf16.mxu0 0
    %2074 = vmatmul.mubr.bf16.gmra.mrb[0].mxu0 %v2039
    %v2075 = vpop.f32.mrb[0].mxu0
    %v2076 = vadd.f32 %v1763, %v2075
    %v2077 = vpop.f32.mrb[0].mxu0
    %v2078 = vpop.f32.mrb[0].mxu0
    %v2079 = vpop.f32.mrb[0].mxu0
    %2080 = vdwg.mxu0
    %vm2081 = vcmp.ge.f32.partialorder %v2076, 0.0
    %v2082 = vmul.f32 %v2076, 0.01
    %v2083 = vsel %vm2081, %v2076, %v2082
    %v2084 = vrot.slane %v1772, 6
    %v2085 = vrot.slane %v1773, 5
    %v2086 = vsel %vm257, %v2085, %v2084
    %v2087 = vpack.c.b16 %v2086, %v2086
    %v2089 = vsel %vm198, %v2087, 0
    %2091 = vmatprep.subr.bf16.mxu0 0
    %2092 = vmatpush1.bf16.msra.mxu0 %v1785
    %2093 = vmatprep.subr.bf16.mxu0 0
    %2094 = vmatpush1.bf16.msra.mxu0 %v1786
    %2095 = vmatprep.subr.bf16.mxu0 0
    %2096 = vmatpush1.bf16.msra.mxu0 0
    %2097 = vmatprep.subr.bf16.mxu0 0
    %2098 = vmatpush1.bf16.msra.mxu0 0
    %2099 = vmatprep.subr.bf16.mxu0 0
    %2100 = vmatpush1.bf16.msra.mxu0 0
    %2101 = vmatprep.subr.bf16.mxu0 0
    %2102 = vmatpush1.bf16.msra.mxu0 0
    %2103 = vmatprep.subr.bf16.mxu0 0
    %2104 = vmatpush1.bf16.msra.mxu0 0
    %2105 = vmatprep.subr.bf16.mxu0 0
    %2106 = vmatpush1.bf16.msra.mxu0 0
    %2107 = vmatprep.subr.bf16.mxu0 0
    %2108 = vmatpush1.bf16.msra.mxu0 0
    %2109 = vmatprep.subr.bf16.mxu0 0
    %2110 = vmatpush1.bf16.msra.mxu0 0
    %2111 = vmatprep.subr.bf16.mxu0 0
    %2112 = vmatpush1.bf16.msra.mxu0 0
    %2113 = vmatprep.subr.bf16.mxu0 0
    %2114 = vmatpush1.bf16.msra.mxu0 0
    %2115 = vmatprep.subr.bf16.mxu0 0
    %2116 = vmatpush1.bf16.msra.mxu0 0
    %2117 = vmatprep.subr.bf16.mxu0 0
    %2118 = vmatpush1.bf16.msra.mxu0 0
    %2119 = vmatprep.subr.bf16.mxu0 0
    %2120 = vmatpush1.bf16.msra.mxu0 0
    %2121 = vmatprep.subr.bf16.mxu0 0
    %2122 = vmatpush1.bf16.msra.mxu0 0
    %2123 = vmatprep.mubr.bf16.mxu0 0
    %2124 = vmatmul.mubr.bf16.gmra.mrb[0].mxu0 %v2089
    %v2125 = vpop.f32.mrb[0].mxu0
    %v2126 = vadd.f32 %v1763, %v2125
    %v2127 = vpop.f32.mrb[0].mxu0
    %v2128 = vpop.f32.mrb[0].mxu0
    %v2129 = vpop.f32.mrb[0].mxu0
    %2130 = vdwg.mxu0
    %vm2131 = vcmp.ge.f32.partialorder %v2126, 0.0
    %v2132 = vmul.f32 %v2126, 0.01
    %v2133 = vsel %vm2131, %v2126, %v2132
    %v2134 = vrot.slane %v1772, 7
    %v2135 = vrot.slane %v1773, 6
    %v2136 = vsel %vm257, %v2135, %v2134
    %v2137 = vpack.c.b16 %v2136, %v2136
    %v2139 = vsel %vm198, %v2137, 0
    %2141 = vmatprep.subr.bf16.mxu0 0
    %2142 = vmatpush1.bf16.msra.mxu0 %v1785
    %2143 = vmatprep.subr.bf16.mxu0 0
    %2144 = vmatpush1.bf16.msra.mxu0 %v1786
    %2145 = vmatprep.subr.bf16.mxu0 0
    %2146 = vmatpush1.bf16.msra.mxu0 0
    %2147 = vmatprep.subr.bf16.mxu0 0
    %2148 = vmatpush1.bf16.msra.mxu0 0
    %2149 = vmatprep.subr.bf16.mxu0 0
    %2150 = vmatpush1.bf16.msra.mxu0 0
    %2151 = vmatprep.subr.bf16.mxu0 0
    %2152 = vmatpush1.bf16.msra.mxu0 0
    %2153 = vmatprep.subr.bf16.mxu0 0
    %2154 = vmatpush1.bf16.msra.mxu0 0
    %2155 = vmatprep.subr.bf16.mxu0 0
    %2156 = vmatpush1.bf16.msra.mxu0 0
    %2157 = vmatprep.subr.bf16.mxu0 0
    %2158 = vmatpush1.bf16.msra.mxu0 0
    %2159 = vmatprep.subr.bf16.mxu0 0
    %2160 = vmatpush1.bf16.msra.mxu0 0
    %2161 = vmatprep.subr.bf16.mxu0 0
    %2162 = vmatpush1.bf16.msra.mxu0 0
    %2163 = vmatprep.subr.bf16.mxu0 0
    %2164 = vmatpush1.bf16.msra.mxu0 0
    %2165 = vmatprep.subr.bf16.mxu0 0
    %2166 = vmatpush1.bf16.msra.mxu0 0
    %2167 = vmatprep.subr.bf16.mxu0 0
    %2168 = vmatpush1.bf16.msra.mxu0 0
    %2169 = vmatprep.subr.bf16.mxu0 0
    %2170 = vmatpush1.bf16.msra.mxu0 0
    %2171 = vmatprep.subr.bf16.mxu0 0
    %2172 = vmatpush1.bf16.msra.mxu0 0
    %2173 = vmatprep.mubr.bf16.mxu0 0
    %2174 = vmatmul.mubr.bf16.gmra.mrb[0].mxu0 %v2139
    %v2175 = vpop.f32.mrb[0].mxu0
    %v2176 = vadd.f32 %v1763, %v2175
    %v2177 = vpop.f32.mrb[0].mxu0
    %v2178 = vpop.f32.mrb[0].mxu0
    %v2179 = vpop.f32.mrb[0].mxu0
    %2180 = vdwg.mxu0
    %vm2181 = vcmp.ge.f32.partialorder %v2176, 0.0
    %v2182 = vmul.f32 %v2176, 0.01
    %v2183 = vsel %vm2181, %v2176, %v2182
    %2185 = vrot.lane.b32.xlu0 %v1883, 32
    %v2186 = vpop.permute.xlu0 %2185
    %2189 = vrot.lane.b32.xlu0 %v1933, 64
    %v2190 = vpop.permute.xlu0 %2189
    %2193 = vrot.lane.b32.xlu0 %v1983, 96
    %v2194 = vpop.permute.xlu0 %2193
    %2197 = vrot.lane.b32.xlu0 %v2083, 32
    %v2198 = vpop.permute.xlu0 %2197
    %2201 = vrot.lane.b32.xlu0 %v2133, 64
    %v2202 = vpop.permute.xlu0 %2201
    %2205 = vrot.lane.b32.xlu0 %v2183, 96
    %v2206 = vpop.permute.xlu0 %2205
    %v2208 = vsel %vm198, %v1834, %v2186
    %vm2209 = vcmask 523264
    %v2210 = vsel %vm2209, %v2208, %v2190
    %vm2211 = vcmask 785408
    %v2212 = vsel %vm2211, %v2210, %v2194
    %v2213 = vsel %vm198, %v2033, %v2198
    %v2214 = vsel %vm2209, %v2213, %v2202
    %v2215 = vsel %vm2211, %v2214, %v2206
    %v2218 = vcombine.low %v2212, %v2215
    %v2220 = vunpack.c.l.s4 1983009808
    %v2221 = vunpack.c.0.s8 %v2220
    %v2222 = vlaneseq
    %v2223 = vshrl.u32 %v2222, 7
    %v2224 = vsub.s32 %v2221, %v2223
    %v2225 = vrot.slane %v2218, %v2224
    %2227 = vst [vmem:[#allocation13] sm:$0xf] %v2225
    // Predicated region
    $region62: #{tpu_custom_call.1} parent=1 // pred_check
      _
    $region63: #{tpu_custom_call.1} parent=1 // pred_check_branch
      %2229 = sbr.rel (0) target = $region65
    $region64: #{tpu_custom_call.1} parent=1 // pred_region
      %s2231 = ssub.s32 64, 64
      %2232 = vsyncadd [#allocation4], %s2231
      %s2234 = sshll.u32 [#allocation13], 4
      %s2235 = int_to_ptr.vmem [resolvable:$true] %s2234
      %2237 = dma.vmem_to_hbm [thread:$0]  %s2235, 64, %s9, [#allocation4]
    $region65: #{tpu_custom_call.1} parent=1 // pred_fallthru
      _
    // Predicated region
    $region66: #{tpu_custom_call.1} parent=1 // pred_check
      _
    $region67: #{tpu_custom_call.1} parent=1 // pred_check_branch
      %2239 = sbr.rel (0) target = $region69
    $region68: #{tpu_custom_call.1} parent=1 // pred_region
      %2240 = dma.done [#allocation4], 64
    $region69: #{tpu_custom_call.1} parent=1 // pred_fallthru
      _
    %2241 = vsyncpa [#allocation3], 1
    %2242 = vsyncpa [#allocation6], 1
    %2243 = vsyncpa [#allocation9], 1
    %2244 = vsyncpa [#allocation12], 1
    %2245 = vsyncpa [#allocation4], 1

</llo_original>
